<compile_context>
chip_gen: v6e
topology: v6e:2x2x1
jax: 0.10.0
libtpu: 0.0.40
codegen_flags: <defaults>
</compile_context>

<pallas_src>
import functools

import jax
import jax.numpy as jnp
from jax.experimental import pallas as pl
from jax.experimental.pallas import tpu as pltpu


# ------------------------------------------------------------------
# Kernel bodies
# ------------------------------------------------------------------
def _mlp_body(x, w1, b1, w2, b2):
    # Linear -> ReLU -> Linear -> Tanh (biases pre-shaped (1, hidden)).
    h = jnp.dot(x, w1, preferred_element_type=jnp.float32) + b1
    h = jnp.maximum(h, 0.0)
    y = jnp.dot(h, w2, preferred_element_type=jnp.float32) + b2
    return jnp.tanh(y)


def _conv_body(xi_ref, wc_ref, bc_ref, out_ref, img_w, ksize):
    """Direct 'valid' Conv2d + ReLU on a lane-flattened image.

    xi_ref : (N, Cin, H*W)     f32 VMEM  (row-major flattened spatial)
    wc_ref : (Cout, Cin*K*K)   f32 VMEM  (OIHW weight, flattened over I,H,W)
    bc_ref : (Cout, 1)         f32 VMEM
    out_ref: (N, Cout, H*W)    f32 VMEM  (padded slab; wrapper reshapes to
                                (N,Cout,H,W) and slices the valid Ho x Wo part)

    Layout: Cout on sublanes (8/8 used), flattened spatial on lanes (256,
    2 full vregs).  Per (kh,kw) tap the whole (Cin, H*W) slab is rolled once
    (XLU) and reused across Cin and Cout; per tap/channel a single broadcast
    FMA (Cout,1)x(1,H*W) updates the accumulator.  Bias is the acc init.
    """
    N, Cin, HW = xi_ref.shape
    Cout = out_ref.shape[1]
    K = ksize
    W = img_w

    wc = wc_ref[...]                                      # (Cout, Cin*K*K)
    # Hoisted once (JAX does not CSE broadcast_in_dim across the n loop).
    bias = jnp.broadcast_to(bc_ref[...], (Cout, HW))      # (Cout, H*W)

    for n in range(N):                                    # N = 2, static
        x_n = xi_ref[n]                                   # (Cin, H*W)
        acc = bias                                        # bias folded into init
        for kh in range(K):
            for kw in range(K):
                s = kh * W + kw                           # flat tap offset
                # shifted[:, p] == x_n[:, p + s]; valid output positions never
                # wrap (p_max + s_max = 221 + 34 < 256), garbage lanes are
                # sliced away in the wrapper.
                shifted = x_n if s == 0 else pltpu.roll(x_n, shift=HW - s, axis=1)
                for ci in range(Cin):
                    idx = ci * K * K + kh * K + kw
                    acc = acc + wc[:, idx:idx + 1] * shifted[ci:ci + 1, :]
        out_ref[n] = jnp.maximum(acc, 0.0)                # lane-dense (Cout, H*W)


def _fused_kernel(img_w, ksize, xm_ref, w1_ref, b1_ref, w2_ref, b2_ref,
                  xi_ref, wc_ref, bc_ref, mlp_out_ref, img_out_ref):
    # MLP branch (MXU + VPU/EUP epilogue).
    mlp_out_ref[...] = _mlp_body(xm_ref[...], w1_ref[...], b1_ref[...],
                                 w2_ref[...], b2_ref[...])
    # Conv branch (vectorized direct convolution, lane-dense output).
    _conv_body(xi_ref, wc_ref, bc_ref, img_out_ref, img_w, ksize)


def _mlp_only_kernel(xm_ref, w1_ref, b1_ref, w2_ref, b2_ref, o_ref):
    o_ref[...] = _mlp_body(xm_ref[...], w1_ref[...], b1_ref[...],
                           w2_ref[...], b2_ref[...])


def _conv_only_kernel(img_w, ksize, xi_ref, wc_ref, bc_ref, o_ref):
    _conv_body(xi_ref, wc_ref, bc_ref, o_ref, img_w, ksize)


# ------------------------------------------------------------------
# Spec helpers
# ------------------------------------------------------------------
def _vmem_full(shape):
    # Whole-array block with grid=(1,) -> exempt from (8,128) divisibility.
    return pl.BlockSpec(shape, lambda i: (0,) * len(shape))


_COMPILER_PARAMS = pltpu.CompilerParams(dimension_semantics=("arbitrary",))


# ------------------------------------------------------------------
# Jitted wrappers (one fused, plus per-branch fallbacks)
# ------------------------------------------------------------------
@functools.partial(jax.jit, static_argnames=("kernel_size",))
def fused_forward(x_mlp, x_img, w1, b1, w2, b2, wc, bc, *, kernel_size):
    """Single pallas_call producing (mlp_out (B,H), image_out (N,Cout,Ho,Wo))."""
    B, Hd = x_mlp.shape
    N, Cin, H, W = x_img.shape
    Cout = wc.shape[0]
    Ho, Wo = H - kernel_size + 1, W - kernel_size + 1
    HW = H * W

    x_img_flat = x_img.reshape(N, Cin, HW)        # contiguous -> metadata only

    kern = functools.partial(_fused_kernel, W, kernel_size)
    mlp_out, img_flat = pl.pallas_call(
        kern,
        grid=(1,),
        out_shape=(jax.ShapeDtypeStruct((B, w2.shape[1]), jnp.float32),
                   jax.ShapeDtypeStruct((N, Cout, HW), jnp.float32)),
        in_specs=[
            _vmem_full((B, Hd)),
            _vmem_full(w1.shape), _vmem_full(b1.shape),
            _vmem_full(w2.shape), _vmem_full(b2.shape),
            _vmem_full((N, Cin, HW)),
            _vmem_full(wc.shape), _vmem_full(bc.shape),
        ],
        out_specs=(_vmem_full((B, w2.shape[1])),
                   _vmem_full((N, Cout, HW))),
        compiler_params=_COMPILER_PARAMS,
    )(x_mlp, w1, b1, w2, b2, x_img_flat, wc, bc)

    # Metadata-only reshape + tiny valid-region slice (fused by XLA).
    img_out = img_flat.reshape(N, Cout, H, W)[:, :, :Ho, :Wo]
    return mlp_out, img_out


@jax.jit
def mlp_forward(x, w1, b1, w2, b2):
    B = x.shape[0]
    return pl.pallas_call(
        _mlp_only_kernel,
        grid=(1,),
        out_shape=jax.ShapeDtypeStruct((B, w2.shape[1]), jnp.float32),
        in_specs=[_vmem_full(x.shape), _vmem_full(w1.shape), _vmem_full(b1.shape),
                  _vmem_full(w2.shape), _vmem_full(b2.shape)],
        out_specs=_vmem_full((B, w2.shape[1])),
        compiler_params=_COMPILER_PARAMS,
    )(x, w1, b1, w2, b2)


@functools.partial(jax.jit, static_argnames=("kernel_size",))
def conv_forward(x_img, wc, bc, *, kernel_size):
    N, Cin, H, W = x_img.shape
    Cout = wc.shape[0]
    Ho, Wo = H - kernel_size + 1, W - kernel_size + 1
    HW = H * W
    x_img_flat = x_img.reshape(N, Cin, HW)
    kern = functools.partial(_conv_only_kernel, W, kernel_size)
    img_flat = pl.pallas_call(
        kern,
        grid=(1,),
        out_shape=jax.ShapeDtypeStruct((N, Cout, HW), jnp.float32),
        in_specs=[_vmem_full((N, Cin, HW)), _vmem_full(wc.shape),
                  _vmem_full(bc.shape)],
        out_specs=_vmem_full((N, Cout, HW)),
        compiler_params=_COMPILER_PARAMS,
    )(x_img_flat, wc, bc)
    return img_flat.reshape(N, Cout, H, W)[:, :, :Ho, :Wo]


# ------------------------------------------------------------------
# DynamicModel equivalent
# ------------------------------------------------------------------
class DynamicModelPallas:
    """Pallas/JAX mirror of the config-instantiated DynamicModel.

    forward(inputs) -> dict: copies inputs, then for each submodel whose name
    is an input key (or has a custom hook), adds outputs[name].  When both
    unhooked branches are present (the configured case) a single fused Pallas
    kernel computes them in one dispatch.
    """

    def __init__(self, hidden=32, channels=4, kernel_size=3, seed=0):
        key = jax.random.PRNGKey(seed)
        k = jax.random.split(key, 6)
        out_channels = channels * 2  # ["channels", "*", 2] expression in config

        # MLP branch params (PyTorch-style uniform(-1/sqrt(fan_in), ...)),
        # stored pre-transposed to (in, out) so the kernel computes x @ W.
        bnd = 1.0 / jnp.sqrt(hidden)
        self.mlp_w1 = jax.random.uniform(k[0], (hidden, hidden), jnp.float32, -bnd, bnd)
        self.mlp_b1 = jax.random.uniform(k[1], (1, hidden), jnp.float32, -bnd, bnd)
        self.mlp_w2 = jax.random.uniform(k[2], (hidden, hidden), jnp.float32, -bnd, bnd)
        self.mlp_b2 = jax.random.uniform(k[3], (1, hidden), jnp.float32, -bnd, bnd)

        # Conv branch params, PyTorch OIHW layout; flattened (Cout, Cin*KH*KW)
        # copy kept for the kernel (VMEM vector weight columns), bias kept as
        # a (Cout, 1) sublane column for the accumulator init.
        fan_in = channels * kernel_size * kernel_size
        cbnd = 1.0 / jnp.sqrt(fan_in)
        self.conv_w_oihw = jax.random.uniform(
            k[4], (out_channels, channels, kernel_size, kernel_size),
            jnp.float32, -cbnd, cbnd)
        self.conv_w_mat = self.conv_w_oihw.reshape(out_channels, -1)
        self.conv_b = jax.random.uniform(k[5], (out_channels,), jnp.float32, -cbnd, cbnd)
        self.conv_b_col = self.conv_b.reshape(out_channels, 1)
        self.kernel_size = kernel_size

        self._custom_forward_hooks = {}
        self._branch_fns = {
            "mlp": lambda x: mlp_forward(x, self.mlp_w1, self.mlp_b1,
                                         self.mlp_w2, self.mlp_b2),
            "image": lambda x: conv_forward(x, self.conv_w_mat, self.conv_b_col,
                                            kernel_size=self.kernel_size),
        }

    def register_custom_forward(self, name, hook):
        # Hook receives (branch_fn, inputs, outputs) instead of an nn.Sequential.
        self._custom_forward_hooks[name] = hook

    def forward(self, inputs, inference_name=None):
        outputs = dict(inputs)
        hooks = self._custom_forward_hooks
        use_fused = ("mlp" in inputs and "image" in inputs
                     and "mlp" not in hooks and "image" not in hooks)
        if use_fused:
            mlp_out, img_out = fused_forward(
                inputs["mlp"], inputs["image"],
                self.mlp_w1, self.mlp_b1, self.mlp_w2, self.mlp_b2,
                self.conv_w_mat, self.conv_b_col, kernel_size=self.kernel_size)
            outputs["mlp"] = mlp_out
            outputs["image"] = img_out
            return outputs
        # General path: only the hooked / missing branch falls off the fused path.
        for name, fn in self._branch_fns.items():
            if name in hooks:
                outputs[name] = hooks[name](fn, inputs, outputs)
            elif name in inputs:
                outputs[name] = fn(inputs[name])
        return outputs


# ------------------------------------------------------------------
# Plain-JAX references for the correctness check
# ------------------------------------------------------------------
def _mlp_ref(x, w1, b1, w2, b2):
    h = jnp.maximum(x @ w1 + b1, 0.0)
    return jnp.tanh(h @ w2 + b2)


def _conv_ref(x_nchw, w_oihw, b):
    y = jax.lax.conv_general_dilated(
        x_nchw, w_oihw, window_strides=(1, 1), padding="VALID",
        dimension_numbers=("NCHW", "OIHW", "NCHW"))
    return jnp.maximum(y + b.reshape(1, -1, 1, 1), 0.0)


if __name__ == "__main__":
    model = DynamicModelPallas(hidden=32, channels=4, kernel_size=3, seed=0)

    key = jax.random.PRNGKey(0)
    k_mlp, k_img = jax.random.split(key)
    inputs = {
        "mlp": jax.random.normal(k_mlp, (2, 32), jnp.float32),
        "image": jax.random.normal(k_img, (2, 4, 16, 16), jnp.float32),
    }

    outputs = model.forward(inputs)
    jax.block_until_ready(outputs)

    # Sanity check against the plain-JAX reference.
    ref_mlp = _mlp_ref(inputs["mlp"], model.mlp_w1, model.mlp_b1,
                       model.mlp_w2, model.mlp_b2)
    ref_img = _conv_ref(inputs["image"], model.conv_w_oihw, model.conv_b)

    assert outputs["mlp"].shape == (2, 32)
    assert outputs["image"].shape == (2, 8, 14, 14)
    assert jnp.allclose(outputs["mlp"], ref_mlp, atol=1e-4, rtol=1e-4)
    assert jnp.allclose(outputs["image"], ref_img, atol=1e-4, rtol=1e-4)

    print("KERNEL_OK")
</pallas_src>

<mosaic_0001>
module attributes {stable_mosaic.version = 11 : i64} {
  func.func @_fused_kernel(%arg0: i32, %arg1: memref<2x32xf32, #tpu.memory_space<vmem>>, %arg2: memref<32x32xf32, #tpu.memory_space<vmem>>, %arg3: memref<1x32xf32, #tpu.memory_space<vmem>>, %arg4: memref<32x32xf32, #tpu.memory_space<vmem>>, %arg5: memref<1x32xf32, #tpu.memory_space<vmem>>, %arg6: memref<2x4x256xf32, #tpu.memory_space<vmem>>, %arg7: memref<8x36xf32, #tpu.memory_space<vmem>>, %arg8: memref<8x1xf32, #tpu.memory_space<vmem>>, %arg9: memref<2x32xf32, #tpu.memory_space<vmem>>, %arg10: memref<2x8x256xf32, #tpu.memory_space<vmem>>) attributes {dimension_semantics = [#tpu.dimension_semantics<arbitrary>], iteration_bounds = array<i64: 1>, scalar_prefetch = 0 : i64, scratch_operands = 0 : i64, tpu.core_type = #tpu.core_type<tc>, window_params = [{pipeline_mode = #tpu.pipeline_mode<synchronous>, transform_indices = @transform_0, window_bounds = array<i64: 2, 32>}, {pipeline_mode = #tpu.pipeline_mode<synchronous>, transform_indices = @transform_1, window_bounds = array<i64: 32, 32>}, {pipeline_mode = #tpu.pipeline_mode<synchronous>, transform_indices = @transform_2, window_bounds = array<i64: 1, 32>}, {pipeline_mode = #tpu.pipeline_mode<synchronous>, transform_indices = @transform_3, window_bounds = array<i64: 32, 32>}, {pipeline_mode = #tpu.pipeline_mode<synchronous>, transform_indices = @transform_4, window_bounds = array<i64: 1, 32>}, {pipeline_mode = #tpu.pipeline_mode<synchronous>, transform_indices = @transform_5, window_bounds = array<i64: 2, 4, 256>}, {pipeline_mode = #tpu.pipeline_mode<synchronous>, transform_indices = @transform_6, window_bounds = array<i64: 8, 36>}, {pipeline_mode = #tpu.pipeline_mode<synchronous>, transform_indices = @transform_7, window_bounds = array<i64: 8, 1>}, {pipeline_mode = #tpu.pipeline_mode<synchronous>, transform_indices = @transform_8, window_bounds = array<i64: 2, 32>}, {pipeline_mode = #tpu.pipeline_mode<synchronous>, transform_indices = @transform_9, window_bounds = array<i64: 2, 8, 256>}]} {
    %c0 = arith.constant 0 : index
    %c0_0 = arith.constant 0 : index
    %0 = vector.load %arg1[%c0, %c0_0] : memref<2x32xf32, #tpu.memory_space<vmem>>, vector<2x32xf32>
    %c0_1 = arith.constant 0 : index
    %c0_2 = arith.constant 0 : index
    %1 = vector.load %arg2[%c0_1, %c0_2] : memref<32x32xf32, #tpu.memory_space<vmem>>, vector<32x32xf32>
    %c0_3 = arith.constant 0 : index
    %c0_4 = arith.constant 0 : index
    %2 = vector.load %arg3[%c0_3, %c0_4] : memref<1x32xf32, #tpu.memory_space<vmem>>, vector<1x32xf32>
    %c0_5 = arith.constant 0 : index
    %c0_6 = arith.constant 0 : index
    %3 = vector.load %arg4[%c0_5, %c0_6] : memref<32x32xf32, #tpu.memory_space<vmem>>, vector<32x32xf32>
    %c0_7 = arith.constant 0 : index
    %c0_8 = arith.constant 0 : index
    %4 = vector.load %arg5[%c0_7, %c0_8] : memref<1x32xf32, #tpu.memory_space<vmem>>, vector<1x32xf32>
    %cst = arith.constant dense<0.000000e+00> : vector<2x32xf32>
    %5 = tpu.matmul %0, %1, %cst {dimension_numbers = #tpu.dot_dimension_numbers<[1], [0], [0], [1], [0, 0, 1, 1], [], []>} : vector<2x32xf32>, vector<32x32xf32>, vector<2x32xf32> -> vector<2x32xf32>
    %6 = vector.broadcast %2 : vector<1x32xf32> to vector<2x32xf32>
    %7 = arith.addf %5, %6 : vector<2x32xf32>
    %cst_9 = arith.constant 0.000000e+00 : f32
    %8 = vector.broadcast %cst_9 : f32 to vector<2x32xf32>
    %9 = arith.maximumf %7, %8 : vector<2x32xf32>
    %cst_10 = arith.constant dense<0.000000e+00> : vector<2x32xf32>
    %10 = tpu.matmul %9, %3, %cst_10 {dimension_numbers = #tpu.dot_dimension_numbers<[1], [0], [0], [1], [0, 0, 1, 1], [], []>} : vector<2x32xf32>, vector<32x32xf32>, vector<2x32xf32> -> vector<2x32xf32>
    %11 = vector.broadcast %4 : vector<1x32xf32> to vector<2x32xf32>
    %12 = arith.addf %10, %11 : vector<2x32xf32>
    %13 = math.tanh %12 : vector<2x32xf32>
    %c0_11 = arith.constant 0 : index
    %c0_12 = arith.constant 0 : index
    %14 = vector.load %arg9[%c0_11, %c0_12] : memref<2x32xf32, #tpu.memory_space<vmem>>, vector<2x32xf32>
    tpu.vector_store %arg9[%c0_11, %c0_12], %13 {strides = array<i32>} : memref<2x32xf32, #tpu.memory_space<vmem>>, vector<2x32xf32>,
    %c0_13 = arith.constant 0 : index
    %c0_14 = arith.constant 0 : index
    %15 = vector.load %arg7[%c0_13, %c0_14] : memref<8x36xf32, #tpu.memory_space<vmem>>, vector<8x36xf32>
    %c0_15 = arith.constant 0 : index
    %c0_16 = arith.constant 0 : index
    %16 = vector.load %arg8[%c0_15, %c0_16] : memref<8x1xf32, #tpu.memory_space<vmem>>, vector<8x1xf32>
    %17 = vector.shape_cast %16 : vector<8x1xf32> to vector<8x1xf32>
    %18 = vector.broadcast %17 : vector<8x1xf32> to vector<8x256xf32>
    %c0_17 = arith.constant 0 : index
    %c0_18 = arith.constant 0 : index
    %c0_19 = arith.constant 0 : index
    %19 = vector.load %arg6[%c0_17, %c0_18, %c0_19] : memref<2x4x256xf32, #tpu.memory_space<vmem>>, vector<1x4x256xf32>
    %20 = vector.shape_cast %19 : vector<1x4x256xf32> to vector<4x256xf32>
    %21 = vector.extract_strided_slice %15 {offsets = [0, 0], sizes = [8, 1], strides = [1, 1]} : vector<8x36xf32> to vector<8x1xf32>
    %22 = vector.extract_strided_slice %20 {offsets = [0, 0], sizes = [1, 256], strides = [1, 1]} : vector<4x256xf32> to vector<1x256xf32>
    %23 = vector.broadcast %21 : vector<8x1xf32> to vector<8x256xf32>
    %24 = vector.broadcast %22 : vector<1x256xf32> to vector<8x256xf32>
    %25 = arith.mulf %23, %24 : vector<8x256xf32>
    %26 = arith.addf %18, %25 : vector<8x256xf32>
    %27 = vector.extract_strided_slice %15 {offsets = [0, 9], sizes = [8, 1], strides = [1, 1]} : vector<8x36xf32> to vector<8x1xf32>
    %28 = vector.extract_strided_slice %20 {offsets = [1, 0], sizes = [1, 256], strides = [1, 1]} : vector<4x256xf32> to vector<1x256xf32>
    %29 = vector.broadcast %27 : vector<8x1xf32> to vector<8x256xf32>
    %30 = vector.broadcast %28 : vector<1x256xf32> to vector<8x256xf32>
    %31 = arith.mulf %29, %30 : vector<8x256xf32>
    %32 = arith.addf %26, %31 : vector<8x256xf32>
    %33 = vector.extract_strided_slice %15 {offsets = [0, 18], sizes = [8, 1], strides = [1, 1]} : vector<8x36xf32> to vector<8x1xf32>
    %34 = vector.extract_strided_slice %20 {offsets = [2, 0], sizes = [1, 256], strides = [1, 1]} : vector<4x256xf32> to vector<1x256xf32>
    %35 = vector.broadcast %33 : vector<8x1xf32> to vector<8x256xf32>
    %36 = vector.broadcast %34 : vector<1x256xf32> to vector<8x256xf32>
    %37 = arith.mulf %35, %36 : vector<8x256xf32>
    %38 = arith.addf %32, %37 : vector<8x256xf32>
    %39 = vector.extract_strided_slice %15 {offsets = [0, 27], sizes = [8, 1], strides = [1, 1]} : vector<8x36xf32> to vector<8x1xf32>
    %40 = vector.extract_strided_slice %20 {offsets = [3, 0], sizes = [1, 256], strides = [1, 1]} : vector<4x256xf32> to vector<1x256xf32>
    %41 = vector.broadcast %39 : vector<8x1xf32> to vector<8x256xf32>
    %42 = vector.broadcast %40 : vector<1x256xf32> to vector<8x256xf32>
    %43 = arith.mulf %41, %42 : vector<8x256xf32>
    %44 = arith.addf %38, %43 : vector<8x256xf32>
    %c255_i32 = arith.constant 255 : i32
    %45 = tpu.dynamic_rotate %20 by %c255_i32 dim 1 : vector<4x256xf32>, i32 -> vector<4x256xf32>
    %46 = vector.extract_strided_slice %15 {offsets = [0, 1], sizes = [8, 1], strides = [1, 1]} : vector<8x36xf32> to vector<8x1xf32>
    %47 = vector.extract_strided_slice %45 {offsets = [0, 0], sizes = [1, 256], strides = [1, 1]} : vector<4x256xf32> to vector<1x256xf32>
    %48 = vector.broadcast %46 : vector<8x1xf32> to vector<8x256xf32>
    %49 = vector.broadcast %47 : vector<1x256xf32> to vector<8x256xf32>
    %50 = arith.mulf %48, %49 : vector<8x256xf32>
    %51 = arith.addf %44, %50 : vector<8x256xf32>
    %52 = vector.extract_strided_slice %15 {offsets = [0, 10], sizes = [8, 1], strides = [1, 1]} : vector<8x36xf32> to vector<8x1xf32>
    %53 = vector.extract_strided_slice %45 {offsets = [1, 0], sizes = [1, 256], strides = [1, 1]} : vector<4x256xf32> to vector<1x256xf32>
    %54 = vector.broadcast %52 : vector<8x1xf32> to vector<8x256xf32>
    %55 = vector.broadcast %53 : vector<1x256xf32> to vector<8x256xf32>
    %56 = arith.mulf %54, %55 : vector<8x256xf32>
    %57 = arith.addf %51, %56 : vector<8x256xf32>
    %58 = vector.extract_strided_slice %15 {offsets = [0, 19], sizes = [8, 1], strides = [1, 1]} : vector<8x36xf32> to vector<8x1xf32>
    %59 = vector.extract_strided_slice %45 {offsets = [2, 0], sizes = [1, 256], strides = [1, 1]} : vector<4x256xf32> to vector<1x256xf32>
    %60 = vector.broadcast %58 : vector<8x1xf32> to vector<8x256xf32>
    %61 = vector.broadcast %59 : vector<1x256xf32> to vector<8x256xf32>
    %62 = arith.mulf %60, %61 : vector<8x256xf32>
    %63 = arith.addf %57, %62 : vector<8x256xf32>
    %64 = vector.extract_strided_slice %15 {offsets = [0, 28], sizes = [8, 1], strides = [1, 1]} : vector<8x36xf32> to vector<8x1xf32>
    %65 = vector.extract_strided_slice %45 {offsets = [3, 0], sizes = [1, 256], strides = [1, 1]} : vector<4x256xf32> to vector<1x256xf32>
    %66 = vector.broadcast %64 : vector<8x1xf32> to vector<8x256xf32>
    %67 = vector.broadcast %65 : vector<1x256xf32> to vector<8x256xf32>
    %68 = arith.mulf %66, %67 : vector<8x256xf32>
    %69 = arith.addf %63, %68 : vector<8x256xf32>
    %c254_i32 = arith.constant 254 : i32
    %70 = tpu.dynamic_rotate %20 by %c254_i32 dim 1 : vector<4x256xf32>, i32 -> vector<4x256xf32>
    %71 = vector.extract_strided_slice %15 {offsets = [0, 2], sizes = [8, 1], strides = [1, 1]} : vector<8x36xf32> to vector<8x1xf32>
    %72 = vector.extract_strided_slice %70 {offsets = [0, 0], sizes = [1, 256], strides = [1, 1]} : vector<4x256xf32> to vector<1x256xf32>
    %73 = vector.broadcast %71 : vector<8x1xf32> to vector<8x256xf32>
    %74 = vector.broadcast %72 : vector<1x256xf32> to vector<8x256xf32>
    %75 = arith.mulf %73, %74 : vector<8x256xf32>
    %76 = arith.addf %69, %75 : vector<8x256xf32>
    %77 = vector.extract_strided_slice %15 {offsets = [0, 11], sizes = [8, 1], strides = [1, 1]} : vector<8x36xf32> to vector<8x1xf32>
    %78 = vector.extract_strided_slice %70 {offsets = [1, 0], sizes = [1, 256], strides = [1, 1]} : vector<4x256xf32> to vector<1x256xf32>
    %79 = vector.broadcast %77 : vector<8x1xf32> to vector<8x256xf32>
    %80 = vector.broadcast %78 : vector<1x256xf32> to vector<8x256xf32>
    %81 = arith.mulf %79, %80 : vector<8x256xf32>
    %82 = arith.addf %76, %81 : vector<8x256xf32>
    %83 = vector.extract_strided_slice %15 {offsets = [0, 20], sizes = [8, 1], strides = [1, 1]} : vector<8x36xf32> to vector<8x1xf32>
    %84 = vector.extract_strided_slice %70 {offsets = [2, 0], sizes = [1, 256], strides = [1, 1]} : vector<4x256xf32> to vector<1x256xf32>
    %85 = vector.broadcast %83 : vector<8x1xf32> to vector<8x256xf32>
    %86 = vector.broadcast %84 : vector<1x256xf32> to vector<8x256xf32>
    %87 = arith.mulf %85, %86 : vector<8x256xf32>
    %88 = arith.addf %82, %87 : vector<8x256xf32>
    %89 = vector.extract_strided_slice %15 {offsets = [0, 29], sizes = [8, 1], strides = [1, 1]} : vector<8x36xf32> to vector<8x1xf32>
    %90 = vector.extract_strided_slice %70 {offsets = [3, 0], sizes = [1, 256], strides = [1, 1]} : vector<4x256xf32> to vector<1x256xf32>
    %91 = vector.broadcast %89 : vector<8x1xf32> to vector<8x256xf32>
    %92 = vector.broadcast %90 : vector<1x256xf32> to vector<8x256xf32>
    %93 = arith.mulf %91, %92 : vector<8x256xf32>
    %94 = arith.addf %88, %93 : vector<8x256xf32>
    %c240_i32 = arith.constant 240 : i32
    %95 = tpu.dynamic_rotate %20 by %c240_i32 dim 1 : vector<4x256xf32>, i32 -> vector<4x256xf32>
    %96 = vector.extract_strided_slice %15 {offsets = [0, 3], sizes = [8, 1], strides = [1, 1]} : vector<8x36xf32> to vector<8x1xf32>
    %97 = vector.extract_strided_slice %95 {offsets = [0, 0], sizes = [1, 256], strides = [1, 1]} : vector<4x256xf32> to vector<1x256xf32>
    %98 = vector.broadcast %96 : vector<8x1xf32> to vector<8x256xf32>
    %99 = vector.broadcast %97 : vector<1x256xf32> to vector<8x256xf32>
    %100 = arith.mulf %98, %99 : vector<8x256xf32>
    %101 = arith.addf %94, %100 : vector<8x256xf32>
    %102 = vector.extract_strided_slice %15 {offsets = [0, 12], sizes = [8, 1], strides = [1, 1]} : vector<8x36xf32> to vector<8x1xf32>
    %103 = vector.extract_strided_slice %95 {offsets = [1, 0], sizes = [1, 256], strides = [1, 1]} : vector<4x256xf32> to vector<1x256xf32>
    %104 = vector.broadcast %102 : vector<8x1xf32> to vector<8x256xf32>
    %105 = vector.broadcast %103 : vector<1x256xf32> to vector<8x256xf32>
    %106 = arith.mulf %104, %105 : vector<8x256xf32>
    %107 = arith.addf %101, %106 : vector<8x256xf32>
    %108 = vector.extract_strided_slice %15 {offsets = [0, 21], sizes = [8, 1], strides = [1, 1]} : vector<8x36xf32> to vector<8x1xf32>
    %109 = vector.extract_strided_slice %95 {offsets = [2, 0], sizes = [1, 256], strides = [1, 1]} : vector<4x256xf32> to vector<1x256xf32>
    %110 = vector.broadcast %108 : vector<8x1xf32> to vector<8x256xf32>
    %111 = vector.broadcast %109 : vector<1x256xf32> to vector<8x256xf32>
    %112 = arith.mulf %110, %111 : vector<8x256xf32>
    %113 = arith.addf %107, %112 : vector<8x256xf32>
    %114 = vector.extract_strided_slice %15 {offsets = [0, 30], sizes = [8, 1], strides = [1, 1]} : vector<8x36xf32> to vector<8x1xf32>
    %115 = vector.extract_strided_slice %95 {offsets = [3, 0], sizes = [1, 256], strides = [1, 1]} : vector<4x256xf32> to vector<1x256xf32>
    %116 = vector.broadcast %114 : vector<8x1xf32> to vector<8x256xf32>
    %117 = vector.broadcast %115 : vector<1x256xf32> to vector<8x256xf32>
    %118 = arith.mulf %116, %117 : vector<8x256xf32>
    %119 = arith.addf %113, %118 : vector<8x256xf32>
    %c239_i32 = arith.constant 239 : i32
    %120 = tpu.dynamic_rotate %20 by %c239_i32 dim 1 : vector<4x256xf32>, i32 -> vector<4x256xf32>
    %121 = vector.extract_strided_slice %15 {offsets = [0, 4], sizes = [8, 1], strides = [1, 1]} : vector<8x36xf32> to vector<8x1xf32>
    %122 = vector.extract_strided_slice %120 {offsets = [0, 0], sizes = [1, 256], strides = [1, 1]} : vector<4x256xf32> to vector<1x256xf32>
    %123 = vector.broadcast %121 : vector<8x1xf32> to vector<8x256xf32>
    %124 = vector.broadcast %122 : vector<1x256xf32> to vector<8x256xf32>
    %125 = arith.mulf %123, %124 : vector<8x256xf32>
    %126 = arith.addf %119, %125 : vector<8x256xf32>
    %127 = vector.extract_strided_slice %15 {offsets = [0, 13], sizes = [8, 1], strides = [1, 1]} : vector<8x36xf32> to vector<8x1xf32>
    %128 = vector.extract_strided_slice %120 {offsets = [1, 0], sizes = [1, 256], strides = [1, 1]} : vector<4x256xf32> to vector<1x256xf32>
    %129 = vector.broadcast %127 : vector<8x1xf32> to vector<8x256xf32>
    %130 = vector.broadcast %128 : vector<1x256xf32> to vector<8x256xf32>
    %131 = arith.mulf %129, %130 : vector<8x256xf32>
    %132 = arith.addf %126, %131 : vector<8x256xf32>
    %133 = vector.extract_strided_slice %15 {offsets = [0, 22], sizes = [8, 1], strides = [1, 1]} : vector<8x36xf32> to vector<8x1xf32>
    %134 = vector.extract_strided_slice %120 {offsets = [2, 0], sizes = [1, 256], strides = [1, 1]} : vector<4x256xf32> to vector<1x256xf32>
    %135 = vector.broadcast %133 : vector<8x1xf32> to vector<8x256xf32>
    %136 = vector.broadcast %134 : vector<1x256xf32> to vector<8x256xf32>
    %137 = arith.mulf %135, %136 : vector<8x256xf32>
    %138 = arith.addf %132, %137 : vector<8x256xf32>
    %139 = vector.extract_strided_slice %15 {offsets = [0, 31], sizes = [8, 1], strides = [1, 1]} : vector<8x36xf32> to vector<8x1xf32>
    %140 = vector.extract_strided_slice %120 {offsets = [3, 0], sizes = [1, 256], strides = [1, 1]} : vector<4x256xf32> to vector<1x256xf32>
    %141 = vector.broadcast %139 : vector<8x1xf32> to vector<8x256xf32>
    %142 = vector.broadcast %140 : vector<1x256xf32> to vector<8x256xf32>
    %143 = arith.mulf %141, %142 : vector<8x256xf32>
    %144 = arith.addf %138, %143 : vector<8x256xf32>
    %c238_i32 = arith.constant 238 : i32
    %145 = tpu.dynamic_rotate %20 by %c238_i32 dim 1 : vector<4x256xf32>, i32 -> vector<4x256xf32>
    %146 = vector.extract_strided_slice %15 {offsets = [0, 5], sizes = [8, 1], strides = [1, 1]} : vector<8x36xf32> to vector<8x1xf32>
    %147 = vector.extract_strided_slice %145 {offsets = [0, 0], sizes = [1, 256], strides = [1, 1]} : vector<4x256xf32> to vector<1x256xf32>
    %148 = vector.broadcast %146 : vector<8x1xf32> to vector<8x256xf32>
    %149 = vector.broadcast %147 : vector<1x256xf32> to vector<8x256xf32>
    %150 = arith.mulf %148, %149 : vector<8x256xf32>
    %151 = arith.addf %144, %150 : vector<8x256xf32>
    %152 = vector.extract_strided_slice %15 {offsets = [0, 14], sizes = [8, 1], strides = [1, 1]} : vector<8x36xf32> to vector<8x1xf32>
    %153 = vector.extract_strided_slice %145 {offsets = [1, 0], sizes = [1, 256], strides = [1, 1]} : vector<4x256xf32> to vector<1x256xf32>
    %154 = vector.broadcast %152 : vector<8x1xf32> to vector<8x256xf32>
    %155 = vector.broadcast %153 : vector<1x256xf32> to vector<8x256xf32>
    %156 = arith.mulf %154, %155 : vector<8x256xf32>
    %157 = arith.addf %151, %156 : vector<8x256xf32>
    %158 = vector.extract_strided_slice %15 {offsets = [0, 23], sizes = [8, 1], strides = [1, 1]} : vector<8x36xf32> to vector<8x1xf32>
    %159 = vector.extract_strided_slice %145 {offsets = [2, 0], sizes = [1, 256], strides = [1, 1]} : vector<4x256xf32> to vector<1x256xf32>
    %160 = vector.broadcast %158 : vector<8x1xf32> to vector<8x256xf32>
    %161 = vector.broadcast %159 : vector<1x256xf32> to vector<8x256xf32>
    %162 = arith.mulf %160, %161 : vector<8x256xf32>
    %163 = arith.addf %157, %162 : vector<8x256xf32>
    %164 = vector.extract_strided_slice %15 {offsets = [0, 32], sizes = [8, 1], strides = [1, 1]} : vector<8x36xf32> to vector<8x1xf32>
    %165 = vector.extract_strided_slice %145 {offsets = [3, 0], sizes = [1, 256], strides = [1, 1]} : vector<4x256xf32> to vector<1x256xf32>
    %166 = vector.broadcast %164 : vector<8x1xf32> to vector<8x256xf32>
    %167 = vector.broadcast %165 : vector<1x256xf32> to vector<8x256xf32>
    %168 = arith.mulf %166, %167 : vector<8x256xf32>
    %169 = arith.addf %163, %168 : vector<8x256xf32>
    %c224_i32 = arith.constant 224 : i32
    %170 = tpu.dynamic_rotate %20 by %c224_i32 dim 1 : vector<4x256xf32>, i32 -> vector<4x256xf32>
    %171 = vector.extract_strided_slice %15 {offsets = [0, 6], sizes = [8, 1], strides = [1, 1]} : vector<8x36xf32> to vector<8x1xf32>
    %172 = vector.extract_strided_slice %170 {offsets = [0, 0], sizes = [1, 256], strides = [1, 1]} : vector<4x256xf32> to vector<1x256xf32>
    %173 = vector.broadcast %171 : vector<8x1xf32> to vector<8x256xf32>
    %174 = vector.broadcast %172 : vector<1x256xf32> to vector<8x256xf32>
    %175 = arith.mulf %173, %174 : vector<8x256xf32>
    %176 = arith.addf %169, %175 : vector<8x256xf32>
    %177 = vector.extract_strided_slice %15 {offsets = [0, 15], sizes = [8, 1], strides = [1, 1]} : vector<8x36xf32> to vector<8x1xf32>
    %178 = vector.extract_strided_slice %170 {offsets = [1, 0], sizes = [1, 256], strides = [1, 1]} : vector<4x256xf32> to vector<1x256xf32>
    %179 = vector.broadcast %177 : vector<8x1xf32> to vector<8x256xf32>
    %180 = vector.broadcast %178 : vector<1x256xf32> to vector<8x256xf32>
    %181 = arith.mulf %179, %180 : vector<8x256xf32>
    %182 = arith.addf %176, %181 : vector<8x256xf32>
    %183 = vector.extract_strided_slice %15 {offsets = [0, 24], sizes = [8, 1], strides = [1, 1]} : vector<8x36xf32> to vector<8x1xf32>
    %184 = vector.extract_strided_slice %170 {offsets = [2, 0], sizes = [1, 256], strides = [1, 1]} : vector<4x256xf32> to vector<1x256xf32>
    %185 = vector.broadcast %183 : vector<8x1xf32> to vector<8x256xf32>
    %186 = vector.broadcast %184 : vector<1x256xf32> to vector<8x256xf32>
    %187 = arith.mulf %185, %186 : vector<8x256xf32>
    %188 = arith.addf %182, %187 : vector<8x256xf32>
    %189 = vector.extract_strided_slice %15 {offsets = [0, 33], sizes = [8, 1], strides = [1, 1]} : vector<8x36xf32> to vector<8x1xf32>
    %190 = vector.extract_strided_slice %170 {offsets = [3, 0], sizes = [1, 256], strides = [1, 1]} : vector<4x256xf32> to vector<1x256xf32>
    %191 = vector.broadcast %189 : vector<8x1xf32> to vector<8x256xf32>
    %192 = vector.broadcast %190 : vector<1x256xf32> to vector<8x256xf32>
    %193 = arith.mulf %191, %192 : vector<8x256xf32>
    %194 = arith.addf %188, %193 : vector<8x256xf32>
    %c223_i32 = arith.constant 223 : i32
    %195 = tpu.dynamic_rotate %20 by %c223_i32 dim 1 : vector<4x256xf32>, i32 -> vector<4x256xf32>
    %196 = vector.extract_strided_slice %15 {offsets = [0, 7], sizes = [8, 1], strides = [1, 1]} : vector<8x36xf32> to vector<8x1xf32>
    %197 = vector.extract_strided_slice %195 {offsets = [0, 0], sizes = [1, 256], strides = [1, 1]} : vector<4x256xf32> to vector<1x256xf32>
    %198 = vector.broadcast %196 : vector<8x1xf32> to vector<8x256xf32>
    %199 = vector.broadcast %197 : vector<1x256xf32> to vector<8x256xf32>
    %200 = arith.mulf %198, %199 : vector<8x256xf32>
    %201 = arith.addf %194, %200 : vector<8x256xf32>
    %202 = vector.extract_strided_slice %15 {offsets = [0, 16], sizes = [8, 1], strides = [1, 1]} : vector<8x36xf32> to vector<8x1xf32>
    %203 = vector.extract_strided_slice %195 {offsets = [1, 0], sizes = [1, 256], strides = [1, 1]} : vector<4x256xf32> to vector<1x256xf32>
    %204 = vector.broadcast %202 : vector<8x1xf32> to vector<8x256xf32>
    %205 = vector.broadcast %203 : vector<1x256xf32> to vector<8x256xf32>
    %206 = arith.mulf %204, %205 : vector<8x256xf32>
    %207 = arith.addf %201, %206 : vector<8x256xf32>
    %208 = vector.extract_strided_slice %15 {offsets = [0, 25], sizes = [8, 1], strides = [1, 1]} : vector<8x36xf32> to vector<8x1xf32>
    %209 = vector.extract_strided_slice %195 {offsets = [2, 0], sizes = [1, 256], strides = [1, 1]} : vector<4x256xf32> to vector<1x256xf32>
    %210 = vector.broadcast %208 : vector<8x1xf32> to vector<8x256xf32>
    %211 = vector.broadcast %209 : vector<1x256xf32> to vector<8x256xf32>
    %212 = arith.mulf %210, %211 : vector<8x256xf32>
    %213 = arith.addf %207, %212 : vector<8x256xf32>
    %214 = vector.extract_strided_slice %15 {offsets = [0, 34], sizes = [8, 1], strides = [1, 1]} : vector<8x36xf32> to vector<8x1xf32>
    %215 = vector.extract_strided_slice %195 {offsets = [3, 0], sizes = [1, 256], strides = [1, 1]} : vector<4x256xf32> to vector<1x256xf32>
    %216 = vector.broadcast %214 : vector<8x1xf32> to vector<8x256xf32>
    %217 = vector.broadcast %215 : vector<1x256xf32> to vector<8x256xf32>
    %218 = arith.mulf %216, %217 : vector<8x256xf32>
    %219 = arith.addf %213, %218 : vector<8x256xf32>
    %c222_i32 = arith.constant 222 : i32
    %220 = tpu.dynamic_rotate %20 by %c222_i32 dim 1 : vector<4x256xf32>, i32 -> vector<4x256xf32>
    %221 = vector.extract_strided_slice %15 {offsets = [0, 8], sizes = [8, 1], strides = [1, 1]} : vector<8x36xf32> to vector<8x1xf32>
    %222 = vector.extract_strided_slice %220 {offsets = [0, 0], sizes = [1, 256], strides = [1, 1]} : vector<4x256xf32> to vector<1x256xf32>
    %223 = vector.broadcast %221 : vector<8x1xf32> to vector<8x256xf32>
    %224 = vector.broadcast %222 : vector<1x256xf32> to vector<8x256xf32>
    %225 = arith.mulf %223, %224 : vector<8x256xf32>
    %226 = arith.addf %219, %225 : vector<8x256xf32>
    %227 = vector.extract_strided_slice %15 {offsets = [0, 17], sizes = [8, 1], strides = [1, 1]} : vector<8x36xf32> to vector<8x1xf32>
    %228 = vector.extract_strided_slice %220 {offsets = [1, 0], sizes = [1, 256], strides = [1, 1]} : vector<4x256xf32> to vector<1x256xf32>
    %229 = vector.broadcast %227 : vector<8x1xf32> to vector<8x256xf32>
    %230 = vector.broadcast %228 : vector<1x256xf32> to vector<8x256xf32>
    %231 = arith.mulf %229, %230 : vector<8x256xf32>
    %232 = arith.addf %226, %231 : vector<8x256xf32>
    %233 = vector.extract_strided_slice %15 {offsets = [0, 26], sizes = [8, 1], strides = [1, 1]} : vector<8x36xf32> to vector<8x1xf32>
    %234 = vector.extract_strided_slice %220 {offsets = [2, 0], sizes = [1, 256], strides = [1, 1]} : vector<4x256xf32> to vector<1x256xf32>
    %235 = vector.broadcast %233 : vector<8x1xf32> to vector<8x256xf32>
    %236 = vector.broadcast %234 : vector<1x256xf32> to vector<8x256xf32>
    %237 = arith.mulf %235, %236 : vector<8x256xf32>
    %238 = arith.addf %232, %237 : vector<8x256xf32>
    %239 = vector.extract_strided_slice %15 {offsets = [0, 35], sizes = [8, 1], strides = [1, 1]} : vector<8x36xf32> to vector<8x1xf32>
    %240 = vector.extract_strided_slice %220 {offsets = [3, 0], sizes = [1, 256], strides = [1, 1]} : vector<4x256xf32> to vector<1x256xf32>
    %241 = vector.broadcast %239 : vector<8x1xf32> to vector<8x256xf32>
    %242 = vector.broadcast %240 : vector<1x256xf32> to vector<8x256xf32>
    %243 = arith.mulf %241, %242 : vector<8x256xf32>
    %244 = arith.addf %238, %243 : vector<8x256xf32>
    %cst_20 = arith.constant 0.000000e+00 : f32
    %245 = vector.broadcast %cst_20 : f32 to vector<8x256xf32>
    %246 = arith.maximumf %244, %245 : vector<8x256xf32>
    %c0_21 = arith.constant 0 : index
    %c0_22 = arith.constant 0 : index
    %c0_23 = arith.constant 0 : index
    %247 = vector.load %arg10[%c0_21, %c0_22, %c0_23] : memref<2x8x256xf32, #tpu.memory_space<vmem>>, vector<1x8x256xf32>
    %248 = vector.shape_cast %247 : vector<1x8x256xf32> to vector<8x256xf32>
    %249 = vector.shape_cast %246 : vector<8x256xf32> to vector<1x8x256xf32>
    tpu.vector_store %arg10[%c0_21, %c0_22, %c0_23], %249 {strides = array<i32>} : memref<2x8x256xf32, #tpu.memory_space<vmem>>, vector<1x8x256xf32>,
    %c1 = arith.constant 1 : index
    %c0_24 = arith.constant 0 : index
    %c0_25 = arith.constant 0 : index
    %250 = vector.load %arg6[%c1, %c0_24, %c0_25] : memref<2x4x256xf32, #tpu.memory_space<vmem>>, vector<1x4x256xf32>
    %251 = vector.shape_cast %250 : vector<1x4x256xf32> to vector<4x256xf32>
    %252 = vector.extract_strided_slice %15 {offsets = [0, 0], sizes = [8, 1], strides = [1, 1]} : vector<8x36xf32> to vector<8x1xf32>
    %253 = vector.extract_strided_slice %251 {offsets = [0, 0], sizes = [1, 256], strides = [1, 1]} : vector<4x256xf32> to vector<1x256xf32>
    %254 = vector.broadcast %252 : vector<8x1xf32> to vector<8x256xf32>
    %255 = vector.broadcast %253 : vector<1x256xf32> to vector<8x256xf32>
    %256 = arith.mulf %254, %255 : vector<8x256xf32>
    %257 = arith.addf %18, %256 : vector<8x256xf32>
    %258 = vector.extract_strided_slice %15 {offsets = [0, 9], sizes = [8, 1], strides = [1, 1]} : vector<8x36xf32> to vector<8x1xf32>
    %259 = vector.extract_strided_slice %251 {offsets = [1, 0], sizes = [1, 256], strides = [1, 1]} : vector<4x256xf32> to vector<1x256xf32>
    %260 = vector.broadcast %258 : vector<8x1xf32> to vector<8x256xf32>
    %261 = vector.broadcast %259 : vector<1x256xf32> to vector<8x256xf32>
    %262 = arith.mulf %260, %261 : vector<8x256xf32>
    %263 = arith.addf %257, %262 : vector<8x256xf32>
    %264 = vector.extract_strided_slice %15 {offsets = [0, 18], sizes = [8, 1], strides = [1, 1]} : vector<8x36xf32> to vector<8x1xf32>
    %265 = vector.extract_strided_slice %251 {offsets = [2, 0], sizes = [1, 256], strides = [1, 1]} : vector<4x256xf32> to vector<1x256xf32>
    %266 = vector.broadcast %264 : vector<8x1xf32> to vector<8x256xf32>
    %267 = vector.broadcast %265 : vector<1x256xf32> to vector<8x256xf32>
    %268 = arith.mulf %266, %267 : vector<8x256xf32>
    %269 = arith.addf %263, %268 : vector<8x256xf32>
    %270 = vector.extract_strided_slice %15 {offsets = [0, 27], sizes = [8, 1], strides = [1, 1]} : vector<8x36xf32> to vector<8x1xf32>
    %271 = vector.extract_strided_slice %251 {offsets = [3, 0], sizes = [1, 256], strides = [1, 1]} : vector<4x256xf32> to vector<1x256xf32>
    %272 = vector.broadcast %270 : vector<8x1xf32> to vector<8x256xf32>
    %273 = vector.broadcast %271 : vector<1x256xf32> to vector<8x256xf32>
    %274 = arith.mulf %272, %273 : vector<8x256xf32>
    %275 = arith.addf %269, %274 : vector<8x256xf32>
    %c255_i32_26 = arith.constant 255 : i32
    %276 = tpu.dynamic_rotate %251 by %c255_i32_26 dim 1 : vector<4x256xf32>, i32 -> vector<4x256xf32>
    %277 = vector.extract_strided_slice %15 {offsets = [0, 1], sizes = [8, 1], strides = [1, 1]} : vector<8x36xf32> to vector<8x1xf32>
    %278 = vector.extract_strided_slice %276 {offsets = [0, 0], sizes = [1, 256], strides = [1, 1]} : vector<4x256xf32> to vector<1x256xf32>
    %279 = vector.broadcast %277 : vector<8x1xf32> to vector<8x256xf32>
    %280 = vector.broadcast %278 : vector<1x256xf32> to vector<8x256xf32>
    %281 = arith.mulf %279, %280 : vector<8x256xf32>
    %282 = arith.addf %275, %281 : vector<8x256xf32>
    %283 = vector.extract_strided_slice %15 {offsets = [0, 10], sizes = [8, 1], strides = [1, 1]} : vector<8x36xf32> to vector<8x1xf32>
    %284 = vector.extract_strided_slice %276 {offsets = [1, 0], sizes = [1, 256], strides = [1, 1]} : vector<4x256xf32> to vector<1x256xf32>
    %285 = vector.broadcast %283 : vector<8x1xf32> to vector<8x256xf32>
    %286 = vector.broadcast %284 : vector<1x256xf32> to vector<8x256xf32>
    %287 = arith.mulf %285, %286 : vector<8x256xf32>
    %288 = arith.addf %282, %287 : vector<8x256xf32>
    %289 = vector.extract_strided_slice %15 {offsets = [0, 19], sizes = [8, 1], strides = [1, 1]} : vector<8x36xf32> to vector<8x1xf32>
    %290 = vector.extract_strided_slice %276 {offsets = [2, 0], sizes = [1, 256], strides = [1, 1]} : vector<4x256xf32> to vector<1x256xf32>
    %291 = vector.broadcast %289 : vector<8x1xf32> to vector<8x256xf32>
    %292 = vector.broadcast %290 : vector<1x256xf32> to vector<8x256xf32>
    %293 = arith.mulf %291, %292 : vector<8x256xf32>
    %294 = arith.addf %288, %293 : vector<8x256xf32>
    %295 = vector.extract_strided_slice %15 {offsets = [0, 28], sizes = [8, 1], strides = [1, 1]} : vector<8x36xf32> to vector<8x1xf32>
    %296 = vector.extract_strided_slice %276 {offsets = [3, 0], sizes = [1, 256], strides = [1, 1]} : vector<4x256xf32> to vector<1x256xf32>
    %297 = vector.broadcast %295 : vector<8x1xf32> to vector<8x256xf32>
    %298 = vector.broadcast %296 : vector<1x256xf32> to vector<8x256xf32>
    %299 = arith.mulf %297, %298 : vector<8x256xf32>
    %300 = arith.addf %294, %299 : vector<8x256xf32>
    %c254_i32_27 = arith.constant 254 : i32
    %301 = tpu.dynamic_rotate %251 by %c254_i32_27 dim 1 : vector<4x256xf32>, i32 -> vector<4x256xf32>
    %302 = vector.extract_strided_slice %15 {offsets = [0, 2], sizes = [8, 1], strides = [1, 1]} : vector<8x36xf32> to vector<8x1xf32>
    %303 = vector.extract_strided_slice %301 {offsets = [0, 0], sizes = [1, 256], strides = [1, 1]} : vector<4x256xf32> to vector<1x256xf32>
    %304 = vector.broadcast %302 : vector<8x1xf32> to vector<8x256xf32>
    %305 = vector.broadcast %303 : vector<1x256xf32> to vector<8x256xf32>
    %306 = arith.mulf %304, %305 : vector<8x256xf32>
    %307 = arith.addf %300, %306 : vector<8x256xf32>
    %308 = vector.extract_strided_slice %15 {offsets = [0, 11], sizes = [8, 1], strides = [1, 1]} : vector<8x36xf32> to vector<8x1xf32>
    %309 = vector.extract_strided_slice %301 {offsets = [1, 0], sizes = [1, 256], strides = [1, 1]} : vector<4x256xf32> to vector<1x256xf32>
    %310 = vector.broadcast %308 : vector<8x1xf32> to vector<8x256xf32>
    %311 = vector.broadcast %309 : vector<1x256xf32> to vector<8x256xf32>
    %312 = arith.mulf %310, %311 : vector<8x256xf32>
    %313 = arith.addf %307, %312 : vector<8x256xf32>
    %314 = vector.extract_strided_slice %15 {offsets = [0, 20], sizes = [8, 1], strides = [1, 1]} : vector<8x36xf32> to vector<8x1xf32>
    %315 = vector.extract_strided_slice %301 {offsets = [2, 0], sizes = [1, 256], strides = [1, 1]} : vector<4x256xf32> to vector<1x256xf32>
    %316 = vector.broadcast %314 : vector<8x1xf32> to vector<8x256xf32>
    %317 = vector.broadcast %315 : vector<1x256xf32> to vector<8x256xf32>
    %318 = arith.mulf %316, %317 : vector<8x256xf32>
    %319 = arith.addf %313, %318 : vector<8x256xf32>
    %320 = vector.extract_strided_slice %15 {offsets = [0, 29], sizes = [8, 1], strides = [1, 1]} : vector<8x36xf32> to vector<8x1xf32>
    %321 = vector.extract_strided_slice %301 {offsets = [3, 0], sizes = [1, 256], strides = [1, 1]} : vector<4x256xf32> to vector<1x256xf32>
    %322 = vector.broadcast %320 : vector<8x1xf32> to vector<8x256xf32>
    %323 = vector.broadcast %321 : vector<1x256xf32> to vector<8x256xf32>
    %324 = arith.mulf %322, %323 : vector<8x256xf32>
    %325 = arith.addf %319, %324 : vector<8x256xf32>
    %c240_i32_28 = arith.constant 240 : i32
    %326 = tpu.dynamic_rotate %251 by %c240_i32_28 dim 1 : vector<4x256xf32>, i32 -> vector<4x256xf32>
    %327 = vector.extract_strided_slice %15 {offsets = [0, 3], sizes = [8, 1], strides = [1, 1]} : vector<8x36xf32> to vector<8x1xf32>
    %328 = vector.extract_strided_slice %326 {offsets = [0, 0], sizes = [1, 256], strides = [1, 1]} : vector<4x256xf32> to vector<1x256xf32>
    %329 = vector.broadcast %327 : vector<8x1xf32> to vector<8x256xf32>
    %330 = vector.broadcast %328 : vector<1x256xf32> to vector<8x256xf32>
    %331 = arith.mulf %329, %330 : vector<8x256xf32>
    %332 = arith.addf %325, %331 : vector<8x256xf32>
    %333 = vector.extract_strided_slice %15 {offsets = [0, 12], sizes = [8, 1], strides = [1, 1]} : vector<8x36xf32> to vector<8x1xf32>
    %334 = vector.extract_strided_slice %326 {offsets = [1, 0], sizes = [1, 256], strides = [1, 1]} : vector<4x256xf32> to vector<1x256xf32>
    %335 = vector.broadcast %333 : vector<8x1xf32> to vector<8x256xf32>
    %336 = vector.broadcast %334 : vector<1x256xf32> to vector<8x256xf32>
    %337 = arith.mulf %335, %336 : vector<8x256xf32>
    %338 = arith.addf %332, %337 : vector<8x256xf32>
    %339 = vector.extract_strided_slice %15 {offsets = [0, 21], sizes = [8, 1], strides = [1, 1]} : vector<8x36xf32> to vector<8x1xf32>
    %340 = vector.extract_strided_slice %326 {offsets = [2, 0], sizes = [1, 256], strides = [1, 1]} : vector<4x256xf32> to vector<1x256xf32>
    %341 = vector.broadcast %339 : vector<8x1xf32> to vector<8x256xf32>
    %342 = vector.broadcast %340 : vector<1x256xf32> to vector<8x256xf32>
    %343 = arith.mulf %341, %342 : vector<8x256xf32>
    %344 = arith.addf %338, %343 : vector<8x256xf32>
    %345 = vector.extract_strided_slice %15 {offsets = [0, 30], sizes = [8, 1], strides = [1, 1]} : vector<8x36xf32> to vector<8x1xf32>
    %346 = vector.extract_strided_slice %326 {offsets = [3, 0], sizes = [1, 256], strides = [1, 1]} : vector<4x256xf32> to vector<1x256xf32>
    %347 = vector.broadcast %345 : vector<8x1xf32> to vector<8x256xf32>
    %348 = vector.broadcast %346 : vector<1x256xf32> to vector<8x256xf32>
    %349 = arith.mulf %347, %348 : vector<8x256xf32>
    %350 = arith.addf %344, %349 : vector<8x256xf32>
    %c239_i32_29 = arith.constant 239 : i32
    %351 = tpu.dynamic_rotate %251 by %c239_i32_29 dim 1 : vector<4x256xf32>, i32 -> vector<4x256xf32>
    %352 = vector.extract_strided_slice %15 {offsets = [0, 4], sizes = [8, 1], strides = [1, 1]} : vector<8x36xf32> to vector<8x1xf32>
    %353 = vector.extract_strided_slice %351 {offsets = [0, 0], sizes = [1, 256], strides = [1, 1]} : vector<4x256xf32> to vector<1x256xf32>
    %354 = vector.broadcast %352 : vector<8x1xf32> to vector<8x256xf32>
    %355 = vector.broadcast %353 : vector<1x256xf32> to vector<8x256xf32>
    %356 = arith.mulf %354, %355 : vector<8x256xf32>
    %357 = arith.addf %350, %356 : vector<8x256xf32>
    %358 = vector.extract_strided_slice %15 {offsets = [0, 13], sizes = [8, 1], strides = [1, 1]} : vector<8x36xf32> to vector<8x1xf32>
    %359 = vector.extract_strided_slice %351 {offsets = [1, 0], sizes = [1, 256], strides = [1, 1]} : vector<4x256xf32> to vector<1x256xf32>
    %360 = vector.broadcast %358 : vector<8x1xf32> to vector<8x256xf32>
    %361 = vector.broadcast %359 : vector<1x256xf32> to vector<8x256xf32>
    %362 = arith.mulf %360, %361 : vector<8x256xf32>
    %363 = arith.addf %357, %362 : vector<8x256xf32>
    %364 = vector.extract_strided_slice %15 {offsets = [0, 22], sizes = [8, 1], strides = [1, 1]} : vector<8x36xf32> to vector<8x1xf32>
    %365 = vector.extract_strided_slice %351 {offsets = [2, 0], sizes = [1, 256], strides = [1, 1]} : vector<4x256xf32> to vector<1x256xf32>
    %366 = vector.broadcast %364 : vector<8x1xf32> to vector<8x256xf32>
    %367 = vector.broadcast %365 : vector<1x256xf32> to vector<8x256xf32>
    %368 = arith.mulf %366, %367 : vector<8x256xf32>
    %369 = arith.addf %363, %368 : vector<8x256xf32>
    %370 = vector.extract_strided_slice %15 {offsets = [0, 31], sizes = [8, 1], strides = [1, 1]} : vector<8x36xf32> to vector<8x1xf32>
    %371 = vector.extract_strided_slice %351 {offsets = [3, 0], sizes = [1, 256], strides = [1, 1]} : vector<4x256xf32> to vector<1x256xf32>
    %372 = vector.broadcast %370 : vector<8x1xf32> to vector<8x256xf32>
    %373 = vector.broadcast %371 : vector<1x256xf32> to vector<8x256xf32>
    %374 = arith.mulf %372, %373 : vector<8x256xf32>
    %375 = arith.addf %369, %374 : vector<8x256xf32>
    %c238_i32_30 = arith.constant 238 : i32
    %376 = tpu.dynamic_rotate %251 by %c238_i32_30 dim 1 : vector<4x256xf32>, i32 -> vector<4x256xf32>
    %377 = vector.extract_strided_slice %15 {offsets = [0, 5], sizes = [8, 1], strides = [1, 1]} : vector<8x36xf32> to vector<8x1xf32>
    %378 = vector.extract_strided_slice %376 {offsets = [0, 0], sizes = [1, 256], strides = [1, 1]} : vector<4x256xf32> to vector<1x256xf32>
    %379 = vector.broadcast %377 : vector<8x1xf32> to vector<8x256xf32>
    %380 = vector.broadcast %378 : vector<1x256xf32> to vector<8x256xf32>
    %381 = arith.mulf %379, %380 : vector<8x256xf32>
    %382 = arith.addf %375, %381 : vector<8x256xf32>
    %383 = vector.extract_strided_slice %15 {offsets = [0, 14], sizes = [8, 1], strides = [1, 1]} : vector<8x36xf32> to vector<8x1xf32>
    %384 = vector.extract_strided_slice %376 {offsets = [1, 0], sizes = [1, 256], strides = [1, 1]} : vector<4x256xf32> to vector<1x256xf32>
    %385 = vector.broadcast %383 : vector<8x1xf32> to vector<8x256xf32>
    %386 = vector.broadcast %384 : vector<1x256xf32> to vector<8x256xf32>
    %387 = arith.mulf %385, %386 : vector<8x256xf32>
    %388 = arith.addf %382, %387 : vector<8x256xf32>
    %389 = vector.extract_strided_slice %15 {offsets = [0, 23], sizes = [8, 1], strides = [1, 1]} : vector<8x36xf32> to vector<8x1xf32>
    %390 = vector.extract_strided_slice %376 {offsets = [2, 0], sizes = [1, 256], strides = [1, 1]} : vector<4x256xf32> to vector<1x256xf32>
    %391 = vector.broadcast %389 : vector<8x1xf32> to vector<8x256xf32>
    %392 = vector.broadcast %390 : vector<1x256xf32> to vector<8x256xf32>
    %393 = arith.mulf %391, %392 : vector<8x256xf32>
    %394 = arith.addf %388, %393 : vector<8x256xf32>
    %395 = vector.extract_strided_slice %15 {offsets = [0, 32], sizes = [8, 1], strides = [1, 1]} : vector<8x36xf32> to vector<8x1xf32>
    %396 = vector.extract_strided_slice %376 {offsets = [3, 0], sizes = [1, 256], strides = [1, 1]} : vector<4x256xf32> to vector<1x256xf32>
    %397 = vector.broadcast %395 : vector<8x1xf32> to vector<8x256xf32>
    %398 = vector.broadcast %396 : vector<1x256xf32> to vector<8x256xf32>
    %399 = arith.mulf %397, %398 : vector<8x256xf32>
    %400 = arith.addf %394, %399 : vector<8x256xf32>
    %c224_i32_31 = arith.constant 224 : i32
    %401 = tpu.dynamic_rotate %251 by %c224_i32_31 dim 1 : vector<4x256xf32>, i32 -> vector<4x256xf32>
    %402 = vector.extract_strided_slice %15 {offsets = [0, 6], sizes = [8, 1], strides = [1, 1]} : vector<8x36xf32> to vector<8x1xf32>
    %403 = vector.extract_strided_slice %401 {offsets = [0, 0], sizes = [1, 256], strides = [1, 1]} : vector<4x256xf32> to vector<1x256xf32>
    %404 = vector.broadcast %402 : vector<8x1xf32> to vector<8x256xf32>
    %405 = vector.broadcast %403 : vector<1x256xf32> to vector<8x256xf32>
    %406 = arith.mulf %404, %405 : vector<8x256xf32>
    %407 = arith.addf %400, %406 : vector<8x256xf32>
    %408 = vector.extract_strided_slice %15 {offsets = [0, 15], sizes = [8, 1], strides = [1, 1]} : vector<8x36xf32> to vector<8x1xf32>
    %409 = vector.extract_strided_slice %401 {offsets = [1, 0], sizes = [1, 256], strides = [1, 1]} : vector<4x256xf32> to vector<1x256xf32>
    %410 = vector.broadcast %408 : vector<8x1xf32> to vector<8x256xf32>
    %411 = vector.broadcast %409 : vector<1x256xf32> to vector<8x256xf32>
    %412 = arith.mulf %410, %411 : vector<8x256xf32>
    %413 = arith.addf %407, %412 : vector<8x256xf32>
    %414 = vector.extract_strided_slice %15 {offsets = [0, 24], sizes = [8, 1], strides = [1, 1]} : vector<8x36xf32> to vector<8x1xf32>
    %415 = vector.extract_strided_slice %401 {offsets = [2, 0], sizes = [1, 256], strides = [1, 1]} : vector<4x256xf32> to vector<1x256xf32>
    %416 = vector.broadcast %414 : vector<8x1xf32> to vector<8x256xf32>
    %417 = vector.broadcast %415 : vector<1x256xf32> to vector<8x256xf32>
    %418 = arith.mulf %416, %417 : vector<8x256xf32>
    %419 = arith.addf %413, %418 : vector<8x256xf32>
    %420 = vector.extract_strided_slice %15 {offsets = [0, 33], sizes = [8, 1], strides = [1, 1]} : vector<8x36xf32> to vector<8x1xf32>
    %421 = vector.extract_strided_slice %401 {offsets = [3, 0], sizes = [1, 256], strides = [1, 1]} : vector<4x256xf32> to vector<1x256xf32>
    %422 = vector.broadcast %420 : vector<8x1xf32> to vector<8x256xf32>
    %423 = vector.broadcast %421 : vector<1x256xf32> to vector<8x256xf32>
    %424 = arith.mulf %422, %423 : vector<8x256xf32>
    %425 = arith.addf %419, %424 : vector<8x256xf32>
    %c223_i32_32 = arith.constant 223 : i32
    %426 = tpu.dynamic_rotate %251 by %c223_i32_32 dim 1 : vector<4x256xf32>, i32 -> vector<4x256xf32>
    %427 = vector.extract_strided_slice %15 {offsets = [0, 7], sizes = [8, 1], strides = [1, 1]} : vector<8x36xf32> to vector<8x1xf32>
    %428 = vector.extract_strided_slice %426 {offsets = [0, 0], sizes = [1, 256], strides = [1, 1]} : vector<4x256xf32> to vector<1x256xf32>
    %429 = vector.broadcast %427 : vector<8x1xf32> to vector<8x256xf32>
    %430 = vector.broadcast %428 : vector<1x256xf32> to vector<8x256xf32>
    %431 = arith.mulf %429, %430 : vector<8x256xf32>
    %432 = arith.addf %425, %431 : vector<8x256xf32>
    %433 = vector.extract_strided_slice %15 {offsets = [0, 16], sizes = [8, 1], strides = [1, 1]} : vector<8x36xf32> to vector<8x1xf32>
    %434 = vector.extract_strided_slice %426 {offsets = [1, 0], sizes = [1, 256], strides = [1, 1]} : vector<4x256xf32> to vector<1x256xf32>
    %435 = vector.broadcast %433 : vector<8x1xf32> to vector<8x256xf32>
    %436 = vector.broadcast %434 : vector<1x256xf32> to vector<8x256xf32>
    %437 = arith.mulf %435, %436 : vector<8x256xf32>
    %438 = arith.addf %432, %437 : vector<8x256xf32>
    %439 = vector.extract_strided_slice %15 {offsets = [0, 25], sizes = [8, 1], strides = [1, 1]} : vector<8x36xf32> to vector<8x1xf32>
    %440 = vector.extract_strided_slice %426 {offsets = [2, 0], sizes = [1, 256], strides = [1, 1]} : vector<4x256xf32> to vector<1x256xf32>
    %441 = vector.broadcast %439 : vector<8x1xf32> to vector<8x256xf32>
    %442 = vector.broadcast %440 : vector<1x256xf32> to vector<8x256xf32>
    %443 = arith.mulf %441, %442 : vector<8x256xf32>
    %444 = arith.addf %438, %443 : vector<8x256xf32>
    %445 = vector.extract_strided_slice %15 {offsets = [0, 34], sizes = [8, 1], strides = [1, 1]} : vector<8x36xf32> to vector<8x1xf32>
    %446 = vector.extract_strided_slice %426 {offsets = [3, 0], sizes = [1, 256], strides = [1, 1]} : vector<4x256xf32> to vector<1x256xf32>
    %447 = vector.broadcast %445 : vector<8x1xf32> to vector<8x256xf32>
    %448 = vector.broadcast %446 : vector<1x256xf32> to vector<8x256xf32>
    %449 = arith.mulf %447, %448 : vector<8x256xf32>
    %450 = arith.addf %444, %449 : vector<8x256xf32>
    %c222_i32_33 = arith.constant 222 : i32
    %451 = tpu.dynamic_rotate %251 by %c222_i32_33 dim 1 : vector<4x256xf32>, i32 -> vector<4x256xf32>
    %452 = vector.extract_strided_slice %15 {offsets = [0, 8], sizes = [8, 1], strides = [1, 1]} : vector<8x36xf32> to vector<8x1xf32>
    %453 = vector.extract_strided_slice %451 {offsets = [0, 0], sizes = [1, 256], strides = [1, 1]} : vector<4x256xf32> to vector<1x256xf32>
    %454 = vector.broadcast %452 : vector<8x1xf32> to vector<8x256xf32>
    %455 = vector.broadcast %453 : vector<1x256xf32> to vector<8x256xf32>
    %456 = arith.mulf %454, %455 : vector<8x256xf32>
    %457 = arith.addf %450, %456 : vector<8x256xf32>
    %458 = vector.extract_strided_slice %15 {offsets = [0, 17], sizes = [8, 1], strides = [1, 1]} : vector<8x36xf32> to vector<8x1xf32>
    %459 = vector.extract_strided_slice %451 {offsets = [1, 0], sizes = [1, 256], strides = [1, 1]} : vector<4x256xf32> to vector<1x256xf32>
    %460 = vector.broadcast %458 : vector<8x1xf32> to vector<8x256xf32>
    %461 = vector.broadcast %459 : vector<1x256xf32> to vector<8x256xf32>
    %462 = arith.mulf %460, %461 : vector<8x256xf32>
    %463 = arith.addf %457, %462 : vector<8x256xf32>
    %464 = vector.extract_strided_slice %15 {offsets = [0, 26], sizes = [8, 1], strides = [1, 1]} : vector<8x36xf32> to vector<8x1xf32>
    %465 = vector.extract_strided_slice %451 {offsets = [2, 0], sizes = [1, 256], strides = [1, 1]} : vector<4x256xf32> to vector<1x256xf32>
    %466 = vector.broadcast %464 : vector<8x1xf32> to vector<8x256xf32>
    %467 = vector.broadcast %465 : vector<1x256xf32> to vector<8x256xf32>
    %468 = arith.mulf %466, %467 : vector<8x256xf32>
    %469 = arith.addf %463, %468 : vector<8x256xf32>
    %470 = vector.extract_strided_slice %15 {offsets = [0, 35], sizes = [8, 1], strides = [1, 1]} : vector<8x36xf32> to vector<8x1xf32>
    %471 = vector.extract_strided_slice %451 {offsets = [3, 0], sizes = [1, 256], strides = [1, 1]} : vector<4x256xf32> to vector<1x256xf32>
    %472 = vector.broadcast %470 : vector<8x1xf32> to vector<8x256xf32>
    %473 = vector.broadcast %471 : vector<1x256xf32> to vector<8x256xf32>
    %474 = arith.mulf %472, %473 : vector<8x256xf32>
    %475 = arith.addf %469, %474 : vector<8x256xf32>
    %cst_34 = arith.constant 0.000000e+00 : f32
    %476 = vector.broadcast %cst_34 : f32 to vector<8x256xf32>
    %477 = arith.maximumf %475, %476 : vector<8x256xf32>
    %c1_35 = arith.constant 1 : index
    %c0_36 = arith.constant 0 : index
    %c0_37 = arith.constant 0 : index
    %478 = vector.load %arg10[%c1_35, %c0_36, %c0_37] : memref<2x8x256xf32, #tpu.memory_space<vmem>>, vector<1x8x256xf32>
    %479 = vector.shape_cast %478 : vector<1x8x256xf32> to vector<8x256xf32>
    %480 = vector.shape_cast %477 : vector<8x256xf32> to vector<1x8x256xf32>
    tpu.vector_store %arg10[%c1_35, %c0_36, %c0_37], %480 {strides = array<i32>} : memref<2x8x256xf32, #tpu.memory_space<vmem>>, vector<1x8x256xf32>,
    return
  }
  func.func @transform_0(%arg0: i32) -> (i32, i32) {
    %c0_i32 = arith.constant 0 : i32
    %c0_i32_0 = arith.constant 0 : i32
    %c0_i32_1 = arith.constant 0 : i32
    return %c0_i32, %c0_i32_0 : i32, i32
  }
  func.func @transform_1(%arg0: i32) -> (i32, i32) {
    %c0_i32 = arith.constant 0 : i32
    %c0_i32_0 = arith.constant 0 : i32
    %c0_i32_1 = arith.constant 0 : i32
    return %c0_i32, %c0_i32_0 : i32, i32
  }
  func.func @transform_2(%arg0: i32) -> (i32, i32) {
    %c0_i32 = arith.constant 0 : i32
    %c0_i32_0 = arith.constant 0 : i32
    %c0_i32_1 = arith.constant 0 : i32
    return %c0_i32, %c0_i32_0 : i32, i32
  }
  func.func @transform_3(%arg0: i32) -> (i32, i32) {
    %c0_i32 = arith.constant 0 : i32
    %c0_i32_0 = arith.constant 0 : i32
    %c0_i32_1 = arith.constant 0 : i32
    return %c0_i32, %c0_i32_0 : i32, i32
  }
  func.func @transform_4(%arg0: i32) -> (i32, i32) {
    %c0_i32 = arith.constant 0 : i32
    %c0_i32_0 = arith.constant 0 : i32
    %c0_i32_1 = arith.constant 0 : i32
    return %c0_i32, %c0_i32_0 : i32, i32
  }
  func.func @transform_5(%arg0: i32) -> (i32, i32, i32) {
    %c0_i32 = arith.constant 0 : i32
    %c0_i32_0 = arith.constant 0 : i32
    %c0_i32_1 = arith.constant 0 : i32
    %c0_i32_2 = arith.constant 0 : i32
    return %c0_i32, %c0_i32_0, %c0_i32_1 : i32, i32, i32
  }
  func.func @transform_6(%arg0: i32) -> (i32, i32) {
    %c0_i32 = arith.constant 0 : i32
    %c0_i32_0 = arith.constant 0 : i32
    %c0_i32_1 = arith.constant 0 : i32
    return %c0_i32, %c0_i32_0 : i32, i32
  }
  func.func @transform_7(%arg0: i32) -> (i32, i32) {
    %c0_i32 = arith.constant 0 : i32
    %c0_i32_0 = arith.constant 0 : i32
    %c0_i32_1 = arith.constant 0 : i32
    return %c0_i32, %c0_i32_0 : i32, i32
  }
  func.func @transform_8(%arg0: i32) -> (i32, i32) {
    %c0_i32 = arith.constant 0 : i32
    %c0_i32_0 = arith.constant 0 : i32
    %c0_i32_1 = arith.constant 0 : i32
    return %c0_i32, %c0_i32_0 : i32, i32
  }
  func.func @transform_9(%arg0: i32) -> (i32, i32, i32) {
    %c0_i32 = arith.constant 0 : i32
    %c0_i32_0 = arith.constant 0 : i32
    %c0_i32_1 = arith.constant 0 : i32
    %c0_i32_2 = arith.constant 0 : i32
    return %c0_i32, %c0_i32_0, %c0_i32_1 : i32, i32, i32
  }
}

</mosaic_0001>

<llo_original>
// kernel: fused_forward.1
$region0: #{fused_forward.1}
  #allocation0 [shape = 'u32[]', space=smem, size = 0x4, offset = 0x4, fixed_abs, tag = 'smem constant byte address 0x4 - core index']
  #allocation1 [shape = 'u32[144,128]{1,0:T(1,128)}', space=vmem, size = 0x12000, scoped, tag = 'internal scratch']
  %s0 = inlined_call_operand.vmem [shape: f32[2,32], index: 0, kind: input, shape index: {}]
  %s1 = inlined_call_operand.vmem [shape: f32[32,32], index: 1, kind: input, shape index: {}]
  %s2 = inlined_call_operand.vmem [shape: f32[1,32], index: 2, kind: input, shape index: {}]
  %s3 = inlined_call_operand.vmem [shape: f32[32,32], index: 3, kind: input, shape index: {}]
  %s4 = inlined_call_operand.vmem [shape: f32[1,32], index: 4, kind: input, shape index: {}]
  %s5 = inlined_call_operand.vmem [shape: f32[2,4,256], index: 5, kind: input, shape index: {}]
  %s6 = inlined_call_operand.vmem [shape: f32[8,36], index: 6, kind: input, shape index: {}]
  %s7 = inlined_call_operand.vmem [shape: f32[8,1], index: 7, kind: input, shape index: {}]
  %s8 = inlined_call_operand.hbm [shape: f32[2,32], index: 8, kind: output, shape index: {0}]
  %s9 = inlined_call_operand.vmem [shape: f32[2,8,256], index: 9, kind: output, shape index: {1}]
  %10 = xla_tuple %s8, %s9
  %s11 = sld [smem:[#allocation0]]
  $region50: #{fused_forward.1} parent=0
    _
  %s13 = ssub.s32 1, %s11
  %s14 = scalar_select 0, %s13, %s11
  $region1: #{fused_forward.1} parent=0
    #allocation2 [shape = 'u8[1024]{0}', space=vmem, size = 0x400, scoped, tag = 'output window, operand 0, single buffered']
    #allocation3 [shape = 's32[1]{0}', space=sflag, size = 0x4, scoped, tag = 'scoped memory for fused_forward.1']
    %15 = vsyncpa [#allocation3], 0
    // Predicated region
    $region2: #{fused_forward.1} parent=1 // pred_check
      _
    $region3: #{fused_forward.1} parent=1 // pred_check_branch
      %17 = sbr.rel (0) target = $region5
    $region4: #{fused_forward.1} parent=1 // pred_region
      _
    $region5: #{fused_forward.1} parent=1 // pred_fallthru
      _
    // Predicated region
    $region6: #{fused_forward.1} parent=1 // pred_check
      _
    $region7: #{fused_forward.1} parent=1 // pred_check_branch
      %19 = sbr.rel (0) target = $region9
    $region8: #{fused_forward.1} parent=1 // pred_region
      _
    $region9: #{fused_forward.1} parent=1 // pred_fallthru
      _
    // Predicated region
    $region10: #{fused_forward.1} parent=1 // pred_check
      _
    $region11: #{fused_forward.1} parent=1 // pred_check_branch
      %21 = sbr.rel (0) target = $region13
    $region12: #{fused_forward.1} parent=1 // pred_region
      _
    $region13: #{fused_forward.1} parent=1 // pred_fallthru
      _
    // Predicated region
    $region14: #{fused_forward.1} parent=1 // pred_check
      _
    $region15: #{fused_forward.1} parent=1 // pred_check_branch
      %23 = sbr.rel (0) target = $region17
    $region16: #{fused_forward.1} parent=1 // pred_region
      _
    $region17: #{fused_forward.1} parent=1 // pred_fallthru
      _
    // Predicated region
    $region18: #{fused_forward.1} parent=1 // pred_check
      _
    $region19: #{fused_forward.1} parent=1 // pred_check_branch
      %25 = sbr.rel (0) target = $region21
    $region20: #{fused_forward.1} parent=1 // pred_region
      _
    $region21: #{fused_forward.1} parent=1 // pred_fallthru
      _
    // Predicated region
    $region22: #{fused_forward.1} parent=1 // pred_check
      _
    $region23: #{fused_forward.1} parent=1 // pred_check_branch
      %27 = sbr.rel (0) target = $region25
    $region24: #{fused_forward.1} parent=1 // pred_region
      _
    $region25: #{fused_forward.1} parent=1 // pred_fallthru
      _
    // Predicated region
    $region26: #{fused_forward.1} parent=1 // pred_check
      _
    $region27: #{fused_forward.1} parent=1 // pred_check_branch
      %29 = sbr.rel (0) target = $region29
    $region28: #{fused_forward.1} parent=1 // pred_region
      _
    $region29: #{fused_forward.1} parent=1 // pred_fallthru
      _
    // Predicated region
    $region30: #{fused_forward.1} parent=1 // pred_check
      _
    $region31: #{fused_forward.1} parent=1 // pred_check_branch
      %31 = sbr.rel (0) target = $region33
    $region32: #{fused_forward.1} parent=1 // pred_region
      _
    $region33: #{fused_forward.1} parent=1 // pred_fallthru
      _
    %v32 = vld [vmem:[%s0] sm:$0x3]
    %v33 = vld [vmem:[%s1] sm:$0xff]
    %v34 = vld [vmem:[%s1 + $0x8] sm:$0xff]
    %v35 = vld [vmem:[%s1 + $0x10] sm:$0xff]
    %v36 = vld [vmem:[%s1 + $0x18] sm:$0xff]
    %v37 = vld [vmem:[%s2] sm:$0x1]
    %v38 = vld [vmem:[%s3] sm:$0xff]
    %v39 = vld [vmem:[%s3 + $0x8] sm:$0xff]
    %v40 = vld [vmem:[%s3 + $0x10] sm:$0xff]
    %v41 = vld [vmem:[%s3 + $0x18] sm:$0xff]
    %v42 = vld [vmem:[%s4] sm:$0x1]
    %v44 = vlaneseq
    %v45 = vshrl.u32 %v44, 7
    %v46 = vsub.s32 0, %v45
    %v47 = vrot.slane %v37, %v46
    %vm49 = vcmask 261120
    %v51 = vsel %vm49, %v32, 0
    %53 = vmatprep.subr.mxu0 0.0
    %54 = vmatpush1.msra.mxu0 0.0
    %55 = vmatprep.subr.mxu0 0.0
    %56 = vmatpush1.msra.mxu0 0.0
    %57 = vmatprep.subr.mxu0 0.0
    %58 = vmatpush1.msra.mxu0 0.0
    %59 = vmatprep.subr.mxu0 0.0
    %60 = vmatpush1.msra.mxu0 0.0
    %61 = vmatprep.subr.mxu0 0.0
    %62 = vmatpush1.msra.mxu0 0.0
    %63 = vmatprep.subr.mxu0 0.0
    %64 = vmatpush1.msra.mxu0 0.0
    %65 = vmatprep.subr.mxu0 0.0
    %66 = vmatpush1.msra.mxu0 0.0
    %67 = vmatprep.subr.mxu0 0.0
    %68 = vmatpush1.msra.mxu0 0.0
    %69 = vmatprep.subr.mxu0 0.0
    %70 = vmatpush1.msra.mxu0 0.0
    %71 = vmatprep.subr.mxu0 0.0
    %72 = vmatpush1.msra.mxu0 0.0
    %73 = vmatprep.subr.mxu0 0.0
    %74 = vmatpush1.msra.mxu0 0.0
    %75 = vmatprep.subr.mxu0 0.0
    %76 = vmatpush1.msra.mxu0 0.0
    %77 = vmatprep.subr.mxu0 0.0
    %78 = vmatpush1.msra.mxu0 %v36
    %79 = vmatprep.subr.mxu0 0.0
    %80 = vmatpush1.msra.mxu0 %v35
    %81 = vmatprep.subr.mxu0 0.0
    %82 = vmatpush1.msra.mxu0 %v34
    %83 = vmatprep.subr.mxu0 0.0
    %84 = vmatpush1.msra.mxu0 %v33
    %85 = vmatprep.subr.mxu0 0.0
    %86 = vmatpush2.msra.mxu0 0.0
    %87 = vmatprep.subr.mxu0 0.0
    %88 = vmatpush2.msra.mxu0 0.0
    %89 = vmatprep.subr.mxu0 0.0
    %90 = vmatpush2.msra.mxu0 0.0
    %91 = vmatprep.subr.mxu0 0.0
    %92 = vmatpush2.msra.mxu0 0.0
    %93 = vmatprep.subr.mxu0 0.0
    %94 = vmatpush2.msra.mxu0 0.0
    %95 = vmatprep.subr.mxu0 0.0
    %96 = vmatpush2.msra.mxu0 0.0
    %97 = vmatprep.subr.mxu0 0.0
    %98 = vmatpush2.msra.mxu0 0.0
    %99 = vmatprep.subr.mxu0 0.0
    %100 = vmatpush2.msra.mxu0 0.0
    %101 = vmatprep.subr.mxu0 0.0
    %102 = vmatpush2.msra.mxu0 0.0
    %103 = vmatprep.subr.mxu0 0.0
    %104 = vmatpush2.msra.mxu0 0.0
    %105 = vmatprep.subr.mxu0 0.0
    %106 = vmatpush2.msra.mxu0 0.0
    %107 = vmatprep.subr.mxu0 0.0
    %108 = vmatpush2.msra.mxu0 0.0
    %109 = vmatprep.subr.mxu0 0.0
    %110 = vmatpush2.msra.mxu0 0.0
    %111 = vmatprep.subr.mxu0 0.0
    %112 = vmatpush2.msra.mxu0 0.0
    %113 = vmatprep.subr.mxu0 0.0
    %114 = vmatpush2.msra.mxu0 0.0
    %115 = vmatprep.subr.mxu0 0.0
    %116 = vmatpush2.msra.mxu0 0.0
    %117 = vmatprep.mubr.f32.mxu0 0.0
    %118 = vmatmul.mubr.f32.gmra.mxu0 %v51
    %v119 = vpop.f32.mrf.mxu0
    %v120 = vadd.f32 %v47, %v119
    %v121 = vpop.f32.mrf.mxu0
    %122 = vdwg.mxu0
    %v123 = vmax.f32 %v120, 0.0
    %v125 = vlaneseq
    %v126 = vshrl.u32 %v125, 7
    %v127 = vsub.s32 0, %v126
    %v128 = vrot.slane %v42, %v127
    %v131 = vsel %vm49, %v123, 0
    %133 = vmatprep.subr.mxu0 0.0
    %134 = vmatpush1.msra.mxu0 0.0
    %135 = vmatprep.subr.mxu0 0.0
    %136 = vmatpush1.msra.mxu0 0.0
    %137 = vmatprep.subr.mxu0 0.0
    %138 = vmatpush1.msra.mxu0 0.0
    %139 = vmatprep.subr.mxu0 0.0
    %140 = vmatpush1.msra.mxu0 0.0
    %141 = vmatprep.subr.mxu0 0.0
    %142 = vmatpush1.msra.mxu0 0.0
    %143 = vmatprep.subr.mxu0 0.0
    %144 = vmatpush1.msra.mxu0 0.0
    %145 = vmatprep.subr.mxu0 0.0
    %146 = vmatpush1.msra.mxu0 0.0
    %147 = vmatprep.subr.mxu0 0.0
    %148 = vmatpush1.msra.mxu0 0.0
    %149 = vmatprep.subr.mxu0 0.0
    %150 = vmatpush1.msra.mxu0 0.0
    %151 = vmatprep.subr.mxu0 0.0
    %152 = vmatpush1.msra.mxu0 0.0
    %153 = vmatprep.subr.mxu0 0.0
    %154 = vmatpush1.msra.mxu0 0.0
    %155 = vmatprep.subr.mxu0 0.0
    %156 = vmatpush1.msra.mxu0 0.0
    %157 = vmatprep.subr.mxu0 0.0
    %158 = vmatpush1.msra.mxu0 %v41
    %159 = vmatprep.subr.mxu0 0.0
    %160 = vmatpush1.msra.mxu0 %v40
    %161 = vmatprep.subr.mxu0 0.0
    %162 = vmatpush1.msra.mxu0 %v39
    %163 = vmatprep.subr.mxu0 0.0
    %164 = vmatpush1.msra.mxu0 %v38
    %165 = vmatprep.subr.mxu0 0.0
    %166 = vmatpush2.msra.mxu0 0.0
    %167 = vmatprep.subr.mxu0 0.0
    %168 = vmatpush2.msra.mxu0 0.0
    %169 = vmatprep.subr.mxu0 0.0
    %170 = vmatpush2.msra.mxu0 0.0
    %171 = vmatprep.subr.mxu0 0.0
    %172 = vmatpush2.msra.mxu0 0.0
    %173 = vmatprep.subr.mxu0 0.0
    %174 = vmatpush2.msra.mxu0 0.0
    %175 = vmatprep.subr.mxu0 0.0
    %176 = vmatpush2.msra.mxu0 0.0
    %177 = vmatprep.subr.mxu0 0.0
    %178 = vmatpush2.msra.mxu0 0.0
    %179 = vmatprep.subr.mxu0 0.0
    %180 = vmatpush2.msra.mxu0 0.0
    %181 = vmatprep.subr.mxu0 0.0
    %182 = vmatpush2.msra.mxu0 0.0
    %183 = vmatprep.subr.mxu0 0.0
    %184 = vmatpush2.msra.mxu0 0.0
    %185 = vmatprep.subr.mxu0 0.0
    %186 = vmatpush2.msra.mxu0 0.0
    %187 = vmatprep.subr.mxu0 0.0
    %188 = vmatpush2.msra.mxu0 0.0
    %189 = vmatprep.subr.mxu0 0.0
    %190 = vmatpush2.msra.mxu0 0.0
    %191 = vmatprep.subr.mxu0 0.0
    %192 = vmatpush2.msra.mxu0 0.0
    %193 = vmatprep.subr.mxu0 0.0
    %194 = vmatpush2.msra.mxu0 0.0
    %195 = vmatprep.subr.mxu0 0.0
    %196 = vmatpush2.msra.mxu0 0.0
    %197 = vmatprep.mubr.f32.mxu0 0.0
    %198 = vmatmul.mubr.f32.gmra.mxu0 %v131
    %v199 = vpop.f32.mrf.mxu0
    %v200 = vadd.f32 %v128, %v199
    %v201 = vpop.f32.mrf.mxu0
    %202 = vdwg.mxu0
    %v203 = vtanh.pop %v200
    %vm204 = vcmask 254976
    %205 = vst.msk [vmem:[#allocation2] sm:$0x3] %vm204, %v203
    %v206 = vld [vmem:[%s6] sm:$0xff]
    %v207 = vld [vmem:[%s7] sm:$0xff]
    %209 = vset.pattern.permute.xlu0 0
    %210 = vperm.xlu0 %209, %v207
    %v211 = vpop.permute.xlu0 %210
    %v213 = vld [vmem:[%s5] sm:$0xff]
    %215 = vset.pattern.permute.xlu0 0
    %216 = vperm.xlu0 %215, %v206
    %v217 = vpop.permute.xlu0 %216
    %v220 = vlaneseq
    %v221 = vshrl.u32 %v220, 7
    %v222 = vsub.s32 0, %v221
    %v223 = vrot.slane %v213, %v222
    %v224 = vlaneseq
    %v225 = vshrl.u32 %v224, 7
    %v226 = vsub.s32 4, %v225
    %v227 = vrot.slane %v213, %v226
    %v230 = vlaneseq
    %v231 = vshrl.u32 %v230, 7
    %v232 = vsub.s32 0, %v231
    %v233 = vrot.slane %v223, %v232
    %v234 = vlaneseq
    %v235 = vshrl.u32 %v234, 7
    %v236 = vsub.s32 0, %v235
    %v237 = vrot.slane %v227, %v236
    %v238 = vmul.f32 %v217, %v233
    %v239 = vmul.f32 %v217, %v237
    %v240 = vadd.f32 %v211, %v238
    %v241 = vadd.f32 %v211, %v239
    %242 = vset.pattern.permute.xlu0 9
    %243 = vperm.xlu0 %242, %v206
    %v244 = vpop.permute.xlu0 %243
    %v246 = vlaneseq
    %v247 = vshrl.u32 %v246, 7
    %v248 = vsub.s32 1, %v247
    %v249 = vrot.slane %v213, %v248
    %v250 = vlaneseq
    %v251 = vshrl.u32 %v250, 7
    %v252 = vsub.s32 5, %v251
    %v253 = vrot.slane %v213, %v252
    %v256 = vlaneseq
    %v257 = vshrl.u32 %v256, 7
    %v258 = vsub.s32 1, %v257
    %v259 = vrot.slane %v249, %v258
    %v260 = vlaneseq
    %v261 = vshrl.u32 %v260, 7
    %v262 = vsub.s32 1, %v261
    %v263 = vrot.slane %v253, %v262
    %v264 = vmul.f32 %v244, %v259
    %v265 = vmul.f32 %v244, %v263
    %v266 = vadd.f32 %v240, %v264
    %v267 = vadd.f32 %v241, %v265
    %268 = vset.pattern.permute.xlu0 18
    %269 = vperm.xlu0 %268, %v206
    %v270 = vpop.permute.xlu0 %269
    %v272 = vlaneseq
    %v273 = vshrl.u32 %v272, 7
    %v274 = vsub.s32 2, %v273
    %v275 = vrot.slane %v213, %v274
    %v276 = vlaneseq
    %v277 = vshrl.u32 %v276, 7
    %v278 = vsub.s32 6, %v277
    %v279 = vrot.slane %v213, %v278
    %v282 = vlaneseq
    %v283 = vshrl.u32 %v282, 7
    %v284 = vsub.s32 2, %v283
    %v285 = vrot.slane %v275, %v284
    %v286 = vlaneseq
    %v287 = vshrl.u32 %v286, 7
    %v288 = vsub.s32 2, %v287
    %v289 = vrot.slane %v279, %v288
    %v290 = vmul.f32 %v270, %v285
    %v291 = vmul.f32 %v270, %v289
    %v292 = vadd.f32 %v266, %v290
    %v293 = vadd.f32 %v267, %v291
    %294 = vset.pattern.permute.xlu0 27
    %295 = vperm.xlu0 %294, %v206
    %v296 = vpop.permute.xlu0 %295
    %v298 = vlaneseq
    %v299 = vshrl.u32 %v298, 7
    %v300 = vsub.s32 3, %v299
    %v301 = vrot.slane %v213, %v300
    %v302 = vlaneseq
    %v303 = vshrl.u32 %v302, 7
    %v304 = vsub.s32 7, %v303
    %v305 = vrot.slane %v213, %v304
    %v308 = vlaneseq
    %v309 = vshrl.u32 %v308, 7
    %v310 = vsub.s32 3, %v309
    %v311 = vrot.slane %v301, %v310
    %v312 = vlaneseq
    %v313 = vshrl.u32 %v312, 7
    %v314 = vsub.s32 3, %v313
    %v315 = vrot.slane %v305, %v314
    %v316 = vmul.f32 %v296, %v311
    %v317 = vmul.f32 %v296, %v315
    %v318 = vadd.f32 %v292, %v316
    %v319 = vadd.f32 %v293, %v317
    %v320 = vcombine.high %v213, %v213
    %322 = vrot.lane.b32.xlu0 %v213, 127
    %v323 = vpop.permute.xlu0 %322
    %324 = vrot.lane.b32.xlu0 %v320, 127
    %v325 = vpop.permute.xlu0 %324
    %v326 = vlaneseq
    %v327 = vand.u32 %v326, 127
    %vm328 = vcmp.lt.s32.totalorder %v327, 127
    %v329 = vsel %vm328, %v323, %v325
    %v330 = vsel %vm328, %v325, %v323
    %331 = vset.pattern.permute.xlu0 1
    %332 = vperm.xlu0 %331, %v206
    %v333 = vpop.permute.xlu0 %332
    %v335 = vlaneseq
    %v336 = vshrl.u32 %v335, 7
    %v337 = vsub.s32 0, %v336
    %v338 = vrot.slane %v329, %v337
    %v339 = vlaneseq
    %v340 = vshrl.u32 %v339, 7
    %v341 = vsub.s32 0, %v340
    %v342 = vrot.slane %v330, %v341
    %v343 = vmul.f32 %v333, %v338
    %v344 = vmul.f32 %v333, %v342
    %v345 = vadd.f32 %v318, %v343
    %v346 = vadd.f32 %v319, %v344
    %347 = vset.pattern.permute.xlu0 10
    %348 = vperm.xlu0 %347, %v206
    %v349 = vpop.permute.xlu0 %348
    %v351 = vlaneseq
    %v352 = vshrl.u32 %v351, 7
    %v353 = vsub.s32 1, %v352
    %v354 = vrot.slane %v329, %v353
    %v355 = vlaneseq
    %v356 = vshrl.u32 %v355, 7
    %v357 = vsub.s32 1, %v356
    %v358 = vrot.slane %v330, %v357
    %v359 = vmul.f32 %v349, %v354
    %v360 = vmul.f32 %v349, %v358
    %v361 = vadd.f32 %v345, %v359
    %v362 = vadd.f32 %v346, %v360
    %363 = vset.pattern.permute.xlu0 19
    %364 = vperm.xlu0 %363, %v206
    %v365 = vpop.permute.xlu0 %364
    %v367 = vlaneseq
    %v368 = vshrl.u32 %v367, 7
    %v369 = vsub.s32 2, %v368
    %v370 = vrot.slane %v329, %v369
    %v371 = vlaneseq
    %v372 = vshrl.u32 %v371, 7
    %v373 = vsub.s32 2, %v372
    %v374 = vrot.slane %v330, %v373
    %v375 = vmul.f32 %v365, %v370
    %v376 = vmul.f32 %v365, %v374
    %v377 = vadd.f32 %v361, %v375
    %v378 = vadd.f32 %v362, %v376
    %379 = vset.pattern.permute.xlu0 28
    %380 = vperm.xlu0 %379, %v206
    %v381 = vpop.permute.xlu0 %380
    %v383 = vlaneseq
    %v384 = vshrl.u32 %v383, 7
    %v385 = vsub.s32 3, %v384
    %v386 = vrot.slane %v329, %v385
    %v387 = vlaneseq
    %v388 = vshrl.u32 %v387, 7
    %v389 = vsub.s32 3, %v388
    %v390 = vrot.slane %v330, %v389
    %v391 = vmul.f32 %v381, %v386
    %v392 = vmul.f32 %v381, %v390
    %v393 = vadd.f32 %v377, %v391
    %v394 = vadd.f32 %v378, %v392
    %395 = vrot.lane.b32.xlu0 %v213, 126
    %v396 = vpop.permute.xlu0 %395
    %397 = vrot.lane.b32.xlu0 %v320, 126
    %v398 = vpop.permute.xlu0 %397
    %vm399 = vcmp.lt.s32.totalorder %v327, 126
    %v400 = vsel %vm399, %v396, %v398
    %v401 = vsel %vm399, %v398, %v396
    %402 = vset.pattern.permute.xlu0 2
    %403 = vperm.xlu0 %402, %v206
    %v404 = vpop.permute.xlu0 %403
    %v406 = vlaneseq
    %v407 = vshrl.u32 %v406, 7
    %v408 = vsub.s32 0, %v407
    %v409 = vrot.slane %v400, %v408
    %v410 = vlaneseq
    %v411 = vshrl.u32 %v410, 7
    %v412 = vsub.s32 0, %v411
    %v413 = vrot.slane %v401, %v412
    %v414 = vmul.f32 %v404, %v409
    %v415 = vmul.f32 %v404, %v413
    %v416 = vadd.f32 %v393, %v414
    %v417 = vadd.f32 %v394, %v415
    %418 = vset.pattern.permute.xlu0 11
    %419 = vperm.xlu0 %418, %v206
    %v420 = vpop.permute.xlu0 %419
    %v422 = vlaneseq
    %v423 = vshrl.u32 %v422, 7
    %v424 = vsub.s32 1, %v423
    %v425 = vrot.slane %v400, %v424
    %v426 = vlaneseq
    %v427 = vshrl.u32 %v426, 7
    %v428 = vsub.s32 1, %v427
    %v429 = vrot.slane %v401, %v428
    %v430 = vmul.f32 %v420, %v425
    %v431 = vmul.f32 %v420, %v429
    %v432 = vadd.f32 %v416, %v430
    %v433 = vadd.f32 %v417, %v431
    %434 = vset.pattern.permute.xlu0 20
    %435 = vperm.xlu0 %434, %v206
    %v436 = vpop.permute.xlu0 %435
    %v438 = vlaneseq
    %v439 = vshrl.u32 %v438, 7
    %v440 = vsub.s32 2, %v439
    %v441 = vrot.slane %v400, %v440
    %v442 = vlaneseq
    %v443 = vshrl.u32 %v442, 7
    %v444 = vsub.s32 2, %v443
    %v445 = vrot.slane %v401, %v444
    %v446 = vmul.f32 %v436, %v441
    %v447 = vmul.f32 %v436, %v445
    %v448 = vadd.f32 %v432, %v446
    %v449 = vadd.f32 %v433, %v447
    %450 = vset.pattern.permute.xlu0 29
    %451 = vperm.xlu0 %450, %v206
    %v452 = vpop.permute.xlu0 %451
    %v454 = vlaneseq
    %v455 = vshrl.u32 %v454, 7
    %v456 = vsub.s32 3, %v455
    %v457 = vrot.slane %v400, %v456
    %v458 = vlaneseq
    %v459 = vshrl.u32 %v458, 7
    %v460 = vsub.s32 3, %v459
    %v461 = vrot.slane %v401, %v460
    %v462 = vmul.f32 %v452, %v457
    %v463 = vmul.f32 %v452, %v461
    %v464 = vadd.f32 %v448, %v462
    %v465 = vadd.f32 %v449, %v463
    %466 = vrot.lane.b32.xlu0 %v213, 112
    %v467 = vpop.permute.xlu0 %466
    %468 = vrot.lane.b32.xlu0 %v320, 112
    %v469 = vpop.permute.xlu0 %468
    %vm470 = vcmp.lt.s32.totalorder %v327, 112
    %v471 = vsel %vm470, %v467, %v469
    %v472 = vsel %vm470, %v469, %v467
    %473 = vset.pattern.permute.xlu0 3
    %474 = vperm.xlu0 %473, %v206
    %v475 = vpop.permute.xlu0 %474
    %v477 = vlaneseq
    %v478 = vshrl.u32 %v477, 7
    %v479 = vsub.s32 0, %v478
    %v480 = vrot.slane %v471, %v479
    %v481 = vlaneseq
    %v482 = vshrl.u32 %v481, 7
    %v483 = vsub.s32 0, %v482
    %v484 = vrot.slane %v472, %v483
    %v485 = vmul.f32 %v475, %v480
    %v486 = vmul.f32 %v475, %v484
    %v487 = vadd.f32 %v464, %v485
    %v488 = vadd.f32 %v465, %v486
    %489 = vset.pattern.permute.xlu0 12
    %490 = vperm.xlu0 %489, %v206
    %v491 = vpop.permute.xlu0 %490
    %v493 = vlaneseq
    %v494 = vshrl.u32 %v493, 7
    %v495 = vsub.s32 1, %v494
    %v496 = vrot.slane %v471, %v495
    %v497 = vlaneseq
    %v498 = vshrl.u32 %v497, 7
    %v499 = vsub.s32 1, %v498
    %v500 = vrot.slane %v472, %v499
    %v501 = vmul.f32 %v491, %v496
    %v502 = vmul.f32 %v491, %v500
    %v503 = vadd.f32 %v487, %v501
    %v504 = vadd.f32 %v488, %v502
    %505 = vset.pattern.permute.xlu0 21
    %506 = vperm.xlu0 %505, %v206
    %v507 = vpop.permute.xlu0 %506
    %v509 = vlaneseq
    %v510 = vshrl.u32 %v509, 7
    %v511 = vsub.s32 2, %v510
    %v512 = vrot.slane %v471, %v511
    %v513 = vlaneseq
    %v514 = vshrl.u32 %v513, 7
    %v515 = vsub.s32 2, %v514
    %v516 = vrot.slane %v472, %v515
    %v517 = vmul.f32 %v507, %v512
    %v518 = vmul.f32 %v507, %v516
    %v519 = vadd.f32 %v503, %v517
    %v520 = vadd.f32 %v504, %v518
    %521 = vset.pattern.permute.xlu0 30
    %522 = vperm.xlu0 %521, %v206
    %v523 = vpop.permute.xlu0 %522
    %v525 = vlaneseq
    %v526 = vshrl.u32 %v525, 7
    %v527 = vsub.s32 3, %v526
    %v528 = vrot.slane %v471, %v527
    %v529 = vlaneseq
    %v530 = vshrl.u32 %v529, 7
    %v531 = vsub.s32 3, %v530
    %v532 = vrot.slane %v472, %v531
    %v533 = vmul.f32 %v523, %v528
    %v534 = vmul.f32 %v523, %v532
    %v535 = vadd.f32 %v519, %v533
    %v536 = vadd.f32 %v520, %v534
    %537 = vrot.lane.b32.xlu0 %v213, 111
    %v538 = vpop.permute.xlu0 %537
    %539 = vrot.lane.b32.xlu0 %v320, 111
    %v540 = vpop.permute.xlu0 %539
    %vm541 = vcmp.lt.s32.totalorder %v327, 111
    %v542 = vsel %vm541, %v538, %v540
    %v543 = vsel %vm541, %v540, %v538
    %544 = vset.pattern.permute.xlu0 4
    %545 = vperm.xlu0 %544, %v206
    %v546 = vpop.permute.xlu0 %545
    %v548 = vlaneseq
    %v549 = vshrl.u32 %v548, 7
    %v550 = vsub.s32 0, %v549
    %v551 = vrot.slane %v542, %v550
    %v552 = vlaneseq
    %v553 = vshrl.u32 %v552, 7
    %v554 = vsub.s32 0, %v553
    %v555 = vrot.slane %v543, %v554
    %v556 = vmul.f32 %v546, %v551
    %v557 = vmul.f32 %v546, %v555
    %v558 = vadd.f32 %v535, %v556
    %v559 = vadd.f32 %v536, %v557
    %560 = vset.pattern.permute.xlu0 13
    %561 = vperm.xlu0 %560, %v206
    %v562 = vpop.permute.xlu0 %561
    %v564 = vlaneseq
    %v565 = vshrl.u32 %v564, 7
    %v566 = vsub.s32 1, %v565
    %v567 = vrot.slane %v542, %v566
    %v568 = vlaneseq
    %v569 = vshrl.u32 %v568, 7
    %v570 = vsub.s32 1, %v569
    %v571 = vrot.slane %v543, %v570
    %v572 = vmul.f32 %v562, %v567
    %v573 = vmul.f32 %v562, %v571
    %v574 = vadd.f32 %v558, %v572
    %v575 = vadd.f32 %v559, %v573
    %576 = vset.pattern.permute.xlu0 22
    %577 = vperm.xlu0 %576, %v206
    %v578 = vpop.permute.xlu0 %577
    %v580 = vlaneseq
    %v581 = vshrl.u32 %v580, 7
    %v582 = vsub.s32 2, %v581
    %v583 = vrot.slane %v542, %v582
    %v584 = vlaneseq
    %v585 = vshrl.u32 %v584, 7
    %v586 = vsub.s32 2, %v585
    %v587 = vrot.slane %v543, %v586
    %v588 = vmul.f32 %v578, %v583
    %v589 = vmul.f32 %v578, %v587
    %v590 = vadd.f32 %v574, %v588
    %v591 = vadd.f32 %v575, %v589
    %592 = vset.pattern.permute.xlu0 31
    %593 = vperm.xlu0 %592, %v206
    %v594 = vpop.permute.xlu0 %593
    %v596 = vlaneseq
    %v597 = vshrl.u32 %v596, 7
    %v598 = vsub.s32 3, %v597
    %v599 = vrot.slane %v542, %v598
    %v600 = vlaneseq
    %v601 = vshrl.u32 %v600, 7
    %v602 = vsub.s32 3, %v601
    %v603 = vrot.slane %v543, %v602
    %v604 = vmul.f32 %v594, %v599
    %v605 = vmul.f32 %v594, %v603
    %v606 = vadd.f32 %v590, %v604
    %v607 = vadd.f32 %v591, %v605
    %608 = vrot.lane.b32.xlu0 %v213, 110
    %v609 = vpop.permute.xlu0 %608
    %610 = vrot.lane.b32.xlu0 %v320, 110
    %v611 = vpop.permute.xlu0 %610
    %vm612 = vcmp.lt.s32.totalorder %v327, 110
    %v613 = vsel %vm612, %v609, %v611
    %v614 = vsel %vm612, %v611, %v609
    %615 = vset.pattern.permute.xlu0 5
    %616 = vperm.xlu0 %615, %v206
    %v617 = vpop.permute.xlu0 %616
    %v619 = vlaneseq
    %v620 = vshrl.u32 %v619, 7
    %v621 = vsub.s32 0, %v620
    %v622 = vrot.slane %v613, %v621
    %v623 = vlaneseq
    %v624 = vshrl.u32 %v623, 7
    %v625 = vsub.s32 0, %v624
    %v626 = vrot.slane %v614, %v625
    %v627 = vmul.f32 %v617, %v622
    %v628 = vmul.f32 %v617, %v626
    %v629 = vadd.f32 %v606, %v627
    %v630 = vadd.f32 %v607, %v628
    %631 = vset.pattern.permute.xlu0 14
    %632 = vperm.xlu0 %631, %v206
    %v633 = vpop.permute.xlu0 %632
    %v635 = vlaneseq
    %v636 = vshrl.u32 %v635, 7
    %v637 = vsub.s32 1, %v636
    %v638 = vrot.slane %v613, %v637
    %v639 = vlaneseq
    %v640 = vshrl.u32 %v639, 7
    %v641 = vsub.s32 1, %v640
    %v642 = vrot.slane %v614, %v641
    %v643 = vmul.f32 %v633, %v638
    %v644 = vmul.f32 %v633, %v642
    %v645 = vadd.f32 %v629, %v643
    %v646 = vadd.f32 %v630, %v644
    %647 = vset.pattern.permute.xlu0 23
    %648 = vperm.xlu0 %647, %v206
    %v649 = vpop.permute.xlu0 %648
    %v651 = vlaneseq
    %v652 = vshrl.u32 %v651, 7
    %v653 = vsub.s32 2, %v652
    %v654 = vrot.slane %v613, %v653
    %v655 = vlaneseq
    %v656 = vshrl.u32 %v655, 7
    %v657 = vsub.s32 2, %v656
    %v658 = vrot.slane %v614, %v657
    %v659 = vmul.f32 %v649, %v654
    %v660 = vmul.f32 %v649, %v658
    %v661 = vadd.f32 %v645, %v659
    %v662 = vadd.f32 %v646, %v660
    %663 = vset.pattern.permute.xlu0 32
    %664 = vperm.xlu0 %663, %v206
    %v665 = vpop.permute.xlu0 %664
    %v667 = vlaneseq
    %v668 = vshrl.u32 %v667, 7
    %v669 = vsub.s32 3, %v668
    %v670 = vrot.slane %v613, %v669
    %v671 = vlaneseq
    %v672 = vshrl.u32 %v671, 7
    %v673 = vsub.s32 3, %v672
    %v674 = vrot.slane %v614, %v673
    %v675 = vmul.f32 %v665, %v670
    %v676 = vmul.f32 %v665, %v674
    %v677 = vadd.f32 %v661, %v675
    %v678 = vadd.f32 %v662, %v676
    %679 = vrot.lane.b32.xlu0 %v213, 96
    %v680 = vpop.permute.xlu0 %679
    %681 = vrot.lane.b32.xlu0 %v320, 96
    %v682 = vpop.permute.xlu0 %681
    %vm683 = vcmp.lt.s32.totalorder %v327, 96
    %v684 = vsel %vm683, %v680, %v682
    %v685 = vsel %vm683, %v682, %v680
    %686 = vset.pattern.permute.xlu0 6
    %687 = vperm.xlu0 %686, %v206
    %v688 = vpop.permute.xlu0 %687
    %v690 = vlaneseq
    %v691 = vshrl.u32 %v690, 7
    %v692 = vsub.s32 0, %v691
    %v693 = vrot.slane %v684, %v692
    %v694 = vlaneseq
    %v695 = vshrl.u32 %v694, 7
    %v696 = vsub.s32 0, %v695
    %v697 = vrot.slane %v685, %v696
    %v698 = vmul.f32 %v688, %v693
    %v699 = vmul.f32 %v688, %v697
    %v700 = vadd.f32 %v677, %v698
    %v701 = vadd.f32 %v678, %v699
    %702 = vset.pattern.permute.xlu0 15
    %703 = vperm.xlu0 %702, %v206
    %v704 = vpop.permute.xlu0 %703
    %v706 = vlaneseq
    %v707 = vshrl.u32 %v706, 7
    %v708 = vsub.s32 1, %v707
    %v709 = vrot.slane %v684, %v708
    %v710 = vlaneseq
    %v711 = vshrl.u32 %v710, 7
    %v712 = vsub.s32 1, %v711
    %v713 = vrot.slane %v685, %v712
    %v714 = vmul.f32 %v704, %v709
    %v715 = vmul.f32 %v704, %v713
    %v716 = vadd.f32 %v700, %v714
    %v717 = vadd.f32 %v701, %v715
    %718 = vset.pattern.permute.xlu0 24
    %719 = vperm.xlu0 %718, %v206
    %v720 = vpop.permute.xlu0 %719
    %v722 = vlaneseq
    %v723 = vshrl.u32 %v722, 7
    %v724 = vsub.s32 2, %v723
    %v725 = vrot.slane %v684, %v724
    %v726 = vlaneseq
    %v727 = vshrl.u32 %v726, 7
    %v728 = vsub.s32 2, %v727
    %v729 = vrot.slane %v685, %v728
    %v730 = vmul.f32 %v720, %v725
    %v731 = vmul.f32 %v720, %v729
    %v732 = vadd.f32 %v716, %v730
    %v733 = vadd.f32 %v717, %v731
    %734 = vset.pattern.permute.xlu0 33
    %735 = vperm.xlu0 %734, %v206
    %v736 = vpop.permute.xlu0 %735
    %v738 = vlaneseq
    %v739 = vshrl.u32 %v738, 7
    %v740 = vsub.s32 3, %v739
    %v741 = vrot.slane %v684, %v740
    %v742 = vlaneseq
    %v743 = vshrl.u32 %v742, 7
    %v744 = vsub.s32 3, %v743
    %v745 = vrot.slane %v685, %v744
    %v746 = vmul.f32 %v736, %v741
    %v747 = vmul.f32 %v736, %v745
    %v748 = vadd.f32 %v732, %v746
    %v749 = vadd.f32 %v733, %v747
    %750 = vrot.lane.b32.xlu0 %v213, 95
    %v751 = vpop.permute.xlu0 %750
    %752 = vrot.lane.b32.xlu0 %v320, 95
    %v753 = vpop.permute.xlu0 %752
    %vm754 = vcmp.lt.s32.totalorder %v327, 95
    %v755 = vsel %vm754, %v751, %v753
    %v756 = vsel %vm754, %v753, %v751
    %757 = vset.pattern.permute.xlu0 7
    %758 = vperm.xlu0 %757, %v206
    %v759 = vpop.permute.xlu0 %758
    %v761 = vlaneseq
    %v762 = vshrl.u32 %v761, 7
    %v763 = vsub.s32 0, %v762
    %v764 = vrot.slane %v755, %v763
    %v765 = vlaneseq
    %v766 = vshrl.u32 %v765, 7
    %v767 = vsub.s32 0, %v766
    %v768 = vrot.slane %v756, %v767
    %v769 = vmul.f32 %v759, %v764
    %v770 = vmul.f32 %v759, %v768
    %v771 = vadd.f32 %v748, %v769
    %v772 = vadd.f32 %v749, %v770
    %773 = vset.pattern.permute.xlu0 16
    %774 = vperm.xlu0 %773, %v206
    %v775 = vpop.permute.xlu0 %774
    %v777 = vlaneseq
    %v778 = vshrl.u32 %v777, 7
    %v779 = vsub.s32 1, %v778
    %v780 = vrot.slane %v755, %v779
    %v781 = vlaneseq
    %v782 = vshrl.u32 %v781, 7
    %v783 = vsub.s32 1, %v782
    %v784 = vrot.slane %v756, %v783
    %v785 = vmul.f32 %v775, %v780
    %v786 = vmul.f32 %v775, %v784
    %v787 = vadd.f32 %v771, %v785
    %v788 = vadd.f32 %v772, %v786
    %789 = vset.pattern.permute.xlu0 25
    %790 = vperm.xlu0 %789, %v206
    %v791 = vpop.permute.xlu0 %790
    %v793 = vlaneseq
    %v794 = vshrl.u32 %v793, 7
    %v795 = vsub.s32 2, %v794
    %v796 = vrot.slane %v755, %v795
    %v797 = vlaneseq
    %v798 = vshrl.u32 %v797, 7
    %v799 = vsub.s32 2, %v798
    %v800 = vrot.slane %v756, %v799
    %v801 = vmul.f32 %v791, %v796
    %v802 = vmul.f32 %v791, %v800
    %v803 = vadd.f32 %v787, %v801
    %v804 = vadd.f32 %v788, %v802
    %805 = vset.pattern.permute.xlu0 34
    %806 = vperm.xlu0 %805, %v206
    %v807 = vpop.permute.xlu0 %806
    %v809 = vlaneseq
    %v810 = vshrl.u32 %v809, 7
    %v811 = vsub.s32 3, %v810
    %v812 = vrot.slane %v755, %v811
    %v813 = vlaneseq
    %v814 = vshrl.u32 %v813, 7
    %v815 = vsub.s32 3, %v814
    %v816 = vrot.slane %v756, %v815
    %v817 = vmul.f32 %v807, %v812
    %v818 = vmul.f32 %v807, %v816
    %v819 = vadd.f32 %v803, %v817
    %v820 = vadd.f32 %v804, %v818
    %821 = vrot.lane.b32.xlu0 %v213, 94
    %v822 = vpop.permute.xlu0 %821
    %823 = vrot.lane.b32.xlu0 %v320, 94
    %v824 = vpop.permute.xlu0 %823
    %vm825 = vcmp.lt.s32.totalorder %v327, 94
    %v826 = vsel %vm825, %v822, %v824
    %v827 = vsel %vm825, %v824, %v822
    %828 = vset.pattern.permute.xlu0 8
    %829 = vperm.xlu0 %828, %v206
    %v830 = vpop.permute.xlu0 %829
    %v832 = vlaneseq
    %v833 = vshrl.u32 %v832, 7
    %v834 = vsub.s32 0, %v833
    %v835 = vrot.slane %v826, %v834
    %v836 = vlaneseq
    %v837 = vshrl.u32 %v836, 7
    %v838 = vsub.s32 0, %v837
    %v839 = vrot.slane %v827, %v838
    %v840 = vmul.f32 %v830, %v835
    %v841 = vmul.f32 %v830, %v839
    %v842 = vadd.f32 %v819, %v840
    %v843 = vadd.f32 %v820, %v841
    %844 = vset.pattern.permute.xlu0 17
    %845 = vperm.xlu0 %844, %v206
    %v846 = vpop.permute.xlu0 %845
    %v848 = vlaneseq
    %v849 = vshrl.u32 %v848, 7
    %v850 = vsub.s32 1, %v849
    %v851 = vrot.slane %v826, %v850
    %v852 = vlaneseq
    %v853 = vshrl.u32 %v852, 7
    %v854 = vsub.s32 1, %v853
    %v855 = vrot.slane %v827, %v854
    %v856 = vmul.f32 %v846, %v851
    %v857 = vmul.f32 %v846, %v855
    %v858 = vadd.f32 %v842, %v856
    %v859 = vadd.f32 %v843, %v857
    %860 = vset.pattern.permute.xlu0 26
    %861 = vperm.xlu0 %860, %v206
    %v862 = vpop.permute.xlu0 %861
    %v864 = vlaneseq
    %v865 = vshrl.u32 %v864, 7
    %v866 = vsub.s32 2, %v865
    %v867 = vrot.slane %v826, %v866
    %v868 = vlaneseq
    %v869 = vshrl.u32 %v868, 7
    %v870 = vsub.s32 2, %v869
    %v871 = vrot.slane %v827, %v870
    %v872 = vmul.f32 %v862, %v867
    %v873 = vmul.f32 %v862, %v871
    %v874 = vadd.f32 %v858, %v872
    %v875 = vadd.f32 %v859, %v873
    %876 = vset.pattern.permute.xlu0 35
    %877 = vperm.xlu0 %876, %v206
    %v878 = vpop.permute.xlu0 %877
    %v880 = vlaneseq
    %v881 = vshrl.u32 %v880, 7
    %v882 = vsub.s32 3, %v881
    %v883 = vrot.slane %v826, %v882
    %v884 = vlaneseq
    %v885 = vshrl.u32 %v884, 7
    %v886 = vsub.s32 3, %v885
    %v887 = vrot.slane %v827, %v886
    %v888 = vmul.f32 %v878, %v883
    %v889 = vmul.f32 %v878, %v887
    %v890 = vadd.f32 %v874, %v888
    %v891 = vadd.f32 %v875, %v889
    %v892 = vmax.f32 %v890, 0.0
    %v893 = vmax.f32 %v891, 0.0
    %894 = vst [vmem:[%s9] sm:$0xff] %v892
    %895 = vst [vmem:[%s9 + $0x8] sm:$0xff] %v893
    %s896 = scalar_lea.vmem %s5, 8
    %v897 = vld [vmem:[%s896] sm:$0xff]
    %v899 = vlaneseq
    %v900 = vshrl.u32 %v899, 7
    %v901 = vsub.s32 0, %v900
    %v902 = vrot.slane %v897, %v901
    %v903 = vlaneseq
    %v904 = vshrl.u32 %v903, 7
    %v905 = vsub.s32 4, %v904
    %v906 = vrot.slane %v897, %v905
    %v909 = vlaneseq
    %v910 = vshrl.u32 %v909, 7
    %v911 = vsub.s32 0, %v910
    %v912 = vrot.slane %v902, %v911
    %v913 = vlaneseq
    %v914 = vshrl.u32 %v913, 7
    %v915 = vsub.s32 0, %v914
    %v916 = vrot.slane %v906, %v915
    %v917 = vmul.f32 %v217, %v912
    %v918 = vmul.f32 %v217, %v916
    %v919 = vadd.f32 %v211, %v917
    %v920 = vadd.f32 %v211, %v918
    %v921 = vlaneseq
    %v922 = vshrl.u32 %v921, 7
    %v923 = vsub.s32 1, %v922
    %v924 = vrot.slane %v897, %v923
    %v925 = vlaneseq
    %v926 = vshrl.u32 %v925, 7
    %v927 = vsub.s32 5, %v926
    %v928 = vrot.slane %v897, %v927
    %v931 = vlaneseq
    %v932 = vshrl.u32 %v931, 7
    %v933 = vsub.s32 1, %v932
    %v934 = vrot.slane %v924, %v933
    %v935 = vlaneseq
    %v936 = vshrl.u32 %v935, 7
    %v937 = vsub.s32 1, %v936
    %v938 = vrot.slane %v928, %v937
    %v939 = vmul.f32 %v244, %v934
    %v940 = vmul.f32 %v244, %v938
    %v941 = vadd.f32 %v919, %v939
    %v942 = vadd.f32 %v920, %v940
    %v943 = vlaneseq
    %v944 = vshrl.u32 %v943, 7
    %v945 = vsub.s32 2, %v944
    %v946 = vrot.slane %v897, %v945
    %v947 = vlaneseq
    %v948 = vshrl.u32 %v947, 7
    %v949 = vsub.s32 6, %v948
    %v950 = vrot.slane %v897, %v949
    %v953 = vlaneseq
    %v954 = vshrl.u32 %v953, 7
    %v955 = vsub.s32 2, %v954
    %v956 = vrot.slane %v946, %v955
    %v957 = vlaneseq
    %v958 = vshrl.u32 %v957, 7
    %v959 = vsub.s32 2, %v958
    %v960 = vrot.slane %v950, %v959
    %v961 = vmul.f32 %v270, %v956
    %v962 = vmul.f32 %v270, %v960
    %v963 = vadd.f32 %v941, %v961
    %v964 = vadd.f32 %v942, %v962
    %v965 = vlaneseq
    %v966 = vshrl.u32 %v965, 7
    %v967 = vsub.s32 3, %v966
    %v968 = vrot.slane %v897, %v967
    %v969 = vlaneseq
    %v970 = vshrl.u32 %v969, 7
    %v971 = vsub.s32 7, %v970
    %v972 = vrot.slane %v897, %v971
    %v975 = vlaneseq
    %v976 = vshrl.u32 %v975, 7
    %v977 = vsub.s32 3, %v976
    %v978 = vrot.slane %v968, %v977
    %v979 = vlaneseq
    %v980 = vshrl.u32 %v979, 7
    %v981 = vsub.s32 3, %v980
    %v982 = vrot.slane %v972, %v981
    %v983 = vmul.f32 %v296, %v978
    %v984 = vmul.f32 %v296, %v982
    %v985 = vadd.f32 %v963, %v983
    %v986 = vadd.f32 %v964, %v984
    %v987 = vcombine.high %v897, %v897
    %989 = vrot.lane.b32.xlu0 %v897, 127
    %v990 = vpop.permute.xlu0 %989
    %991 = vrot.lane.b32.xlu0 %v987, 127
    %v992 = vpop.permute.xlu0 %991
    %v993 = vsel %vm328, %v990, %v992
    %v994 = vsel %vm328, %v992, %v990
    %v995 = vlaneseq
    %v996 = vshrl.u32 %v995, 7
    %v997 = vsub.s32 0, %v996
    %v998 = vrot.slane %v993, %v997
    %v999 = vlaneseq
    %v1000 = vshrl.u32 %v999, 7
    %v1001 = vsub.s32 0, %v1000
    %v1002 = vrot.slane %v994, %v1001
    %v1003 = vmul.f32 %v333, %v998
    %v1004 = vmul.f32 %v333, %v1002
    %v1005 = vadd.f32 %v985, %v1003
    %v1006 = vadd.f32 %v986, %v1004
    %v1007 = vlaneseq
    %v1008 = vshrl.u32 %v1007, 7
    %v1009 = vsub.s32 1, %v1008
    %v1010 = vrot.slane %v993, %v1009
    %v1011 = vlaneseq
    %v1012 = vshrl.u32 %v1011, 7
    %v1013 = vsub.s32 1, %v1012
    %v1014 = vrot.slane %v994, %v1013
    %v1015 = vmul.f32 %v349, %v1010
    %v1016 = vmul.f32 %v349, %v1014
    %v1017 = vadd.f32 %v1005, %v1015
    %v1018 = vadd.f32 %v1006, %v1016
    %v1019 = vlaneseq
    %v1020 = vshrl.u32 %v1019, 7
    %v1021 = vsub.s32 2, %v1020
    %v1022 = vrot.slane %v993, %v1021
    %v1023 = vlaneseq
    %v1024 = vshrl.u32 %v1023, 7
    %v1025 = vsub.s32 2, %v1024
    %v1026 = vrot.slane %v994, %v1025
    %v1027 = vmul.f32 %v365, %v1022
    %v1028 = vmul.f32 %v365, %v1026
    %v1029 = vadd.f32 %v1017, %v1027
    %v1030 = vadd.f32 %v1018, %v1028
    %v1031 = vlaneseq
    %v1032 = vshrl.u32 %v1031, 7
    %v1033 = vsub.s32 3, %v1032
    %v1034 = vrot.slane %v993, %v1033
    %v1035 = vlaneseq
    %v1036 = vshrl.u32 %v1035, 7
    %v1037 = vsub.s32 3, %v1036
    %v1038 = vrot.slane %v994, %v1037
    %v1039 = vmul.f32 %v381, %v1034
    %v1040 = vmul.f32 %v381, %v1038
    %v1041 = vadd.f32 %v1029, %v1039
    %v1042 = vadd.f32 %v1030, %v1040
    %1043 = vrot.lane.b32.xlu0 %v897, 126
    %v1044 = vpop.permute.xlu0 %1043
    %1045 = vrot.lane.b32.xlu0 %v987, 126
    %v1046 = vpop.permute.xlu0 %1045
    %v1047 = vsel %vm399, %v1044, %v1046
    %v1048 = vsel %vm399, %v1046, %v1044
    %v1049 = vlaneseq
    %v1050 = vshrl.u32 %v1049, 7
    %v1051 = vsub.s32 0, %v1050
    %v1052 = vrot.slane %v1047, %v1051
    %v1053 = vlaneseq
    %v1054 = vshrl.u32 %v1053, 7
    %v1055 = vsub.s32 0, %v1054
    %v1056 = vrot.slane %v1048, %v1055
    %v1057 = vmul.f32 %v404, %v1052
    %v1058 = vmul.f32 %v404, %v1056
    %v1059 = vadd.f32 %v1041, %v1057
    %v1060 = vadd.f32 %v1042, %v1058
    %v1061 = vlaneseq
    %v1062 = vshrl.u32 %v1061, 7
    %v1063 = vsub.s32 1, %v1062
    %v1064 = vrot.slane %v1047, %v1063
    %v1065 = vlaneseq
    %v1066 = vshrl.u32 %v1065, 7
    %v1067 = vsub.s32 1, %v1066
    %v1068 = vrot.slane %v1048, %v1067
    %v1069 = vmul.f32 %v420, %v1064
    %v1070 = vmul.f32 %v420, %v1068
    %v1071 = vadd.f32 %v1059, %v1069
    %v1072 = vadd.f32 %v1060, %v1070
    %v1073 = vlaneseq
    %v1074 = vshrl.u32 %v1073, 7
    %v1075 = vsub.s32 2, %v1074
    %v1076 = vrot.slane %v1047, %v1075
    %v1077 = vlaneseq
    %v1078 = vshrl.u32 %v1077, 7
    %v1079 = vsub.s32 2, %v1078
    %v1080 = vrot.slane %v1048, %v1079
    %v1081 = vmul.f32 %v436, %v1076
    %v1082 = vmul.f32 %v436, %v1080
    %v1083 = vadd.f32 %v1071, %v1081
    %v1084 = vadd.f32 %v1072, %v1082
    %v1085 = vlaneseq
    %v1086 = vshrl.u32 %v1085, 7
    %v1087 = vsub.s32 3, %v1086
    %v1088 = vrot.slane %v1047, %v1087
    %v1089 = vlaneseq
    %v1090 = vshrl.u32 %v1089, 7
    %v1091 = vsub.s32 3, %v1090
    %v1092 = vrot.slane %v1048, %v1091
    %v1093 = vmul.f32 %v452, %v1088
    %v1094 = vmul.f32 %v452, %v1092
    %v1095 = vadd.f32 %v1083, %v1093
    %v1096 = vadd.f32 %v1084, %v1094
    %1097 = vrot.lane.b32.xlu0 %v897, 112
    %v1098 = vpop.permute.xlu0 %1097
    %1099 = vrot.lane.b32.xlu0 %v987, 112
    %v1100 = vpop.permute.xlu0 %1099
    %v1101 = vsel %vm470, %v1098, %v1100
    %v1102 = vsel %vm470, %v1100, %v1098
    %v1103 = vlaneseq
    %v1104 = vshrl.u32 %v1103, 7
    %v1105 = vsub.s32 0, %v1104
    %v1106 = vrot.slane %v1101, %v1105
    %v1107 = vlaneseq
    %v1108 = vshrl.u32 %v1107, 7
    %v1109 = vsub.s32 0, %v1108
    %v1110 = vrot.slane %v1102, %v1109
    %v1111 = vmul.f32 %v475, %v1106
    %v1112 = vmul.f32 %v475, %v1110
    %v1113 = vadd.f32 %v1095, %v1111
    %v1114 = vadd.f32 %v1096, %v1112
    %v1115 = vlaneseq
    %v1116 = vshrl.u32 %v1115, 7
    %v1117 = vsub.s32 1, %v1116
    %v1118 = vrot.slane %v1101, %v1117
    %v1119 = vlaneseq
    %v1120 = vshrl.u32 %v1119, 7
    %v1121 = vsub.s32 1, %v1120
    %v1122 = vrot.slane %v1102, %v1121
    %v1123 = vmul.f32 %v491, %v1118
    %v1124 = vmul.f32 %v491, %v1122
    %v1125 = vadd.f32 %v1113, %v1123
    %v1126 = vadd.f32 %v1114, %v1124
    %v1127 = vlaneseq
    %v1128 = vshrl.u32 %v1127, 7
    %v1129 = vsub.s32 2, %v1128
    %v1130 = vrot.slane %v1101, %v1129
    %v1131 = vlaneseq
    %v1132 = vshrl.u32 %v1131, 7
    %v1133 = vsub.s32 2, %v1132
    %v1134 = vrot.slane %v1102, %v1133
    %v1135 = vmul.f32 %v507, %v1130
    %v1136 = vmul.f32 %v507, %v1134
    %v1137 = vadd.f32 %v1125, %v1135
    %v1138 = vadd.f32 %v1126, %v1136
    %v1139 = vlaneseq
    %v1140 = vshrl.u32 %v1139, 7
    %v1141 = vsub.s32 3, %v1140
    %v1142 = vrot.slane %v1101, %v1141
    %v1143 = vlaneseq
    %v1144 = vshrl.u32 %v1143, 7
    %v1145 = vsub.s32 3, %v1144
    %v1146 = vrot.slane %v1102, %v1145
    %v1147 = vmul.f32 %v523, %v1142
    %v1148 = vmul.f32 %v523, %v1146
    %v1149 = vadd.f32 %v1137, %v1147
    %v1150 = vadd.f32 %v1138, %v1148
    %1151 = vrot.lane.b32.xlu0 %v897, 111
    %v1152 = vpop.permute.xlu0 %1151
    %1153 = vrot.lane.b32.xlu0 %v987, 111
    %v1154 = vpop.permute.xlu0 %1153
    %v1155 = vsel %vm541, %v1152, %v1154
    %v1156 = vsel %vm541, %v1154, %v1152
    %v1157 = vlaneseq
    %v1158 = vshrl.u32 %v1157, 7
    %v1159 = vsub.s32 0, %v1158
    %v1160 = vrot.slane %v1155, %v1159
    %v1161 = vlaneseq
    %v1162 = vshrl.u32 %v1161, 7
    %v1163 = vsub.s32 0, %v1162
    %v1164 = vrot.slane %v1156, %v1163
    %v1165 = vmul.f32 %v546, %v1160
    %v1166 = vmul.f32 %v546, %v1164
    %v1167 = vadd.f32 %v1149, %v1165
    %v1168 = vadd.f32 %v1150, %v1166
    %v1169 = vlaneseq
    %v1170 = vshrl.u32 %v1169, 7
    %v1171 = vsub.s32 1, %v1170
    %v1172 = vrot.slane %v1155, %v1171
    %v1173 = vlaneseq
    %v1174 = vshrl.u32 %v1173, 7
    %v1175 = vsub.s32 1, %v1174
    %v1176 = vrot.slane %v1156, %v1175
    %v1177 = vmul.f32 %v562, %v1172
    %v1178 = vmul.f32 %v562, %v1176
    %v1179 = vadd.f32 %v1167, %v1177
    %v1180 = vadd.f32 %v1168, %v1178
    %v1181 = vlaneseq
    %v1182 = vshrl.u32 %v1181, 7
    %v1183 = vsub.s32 2, %v1182
    %v1184 = vrot.slane %v1155, %v1183
    %v1185 = vlaneseq
    %v1186 = vshrl.u32 %v1185, 7
    %v1187 = vsub.s32 2, %v1186
    %v1188 = vrot.slane %v1156, %v1187
    %v1189 = vmul.f32 %v578, %v1184
    %v1190 = vmul.f32 %v578, %v1188
    %v1191 = vadd.f32 %v1179, %v1189
    %v1192 = vadd.f32 %v1180, %v1190
    %v1193 = vlaneseq
    %v1194 = vshrl.u32 %v1193, 7
    %v1195 = vsub.s32 3, %v1194
    %v1196 = vrot.slane %v1155, %v1195
    %v1197 = vlaneseq
    %v1198 = vshrl.u32 %v1197, 7
    %v1199 = vsub.s32 3, %v1198
    %v1200 = vrot.slane %v1156, %v1199
    %v1201 = vmul.f32 %v594, %v1196
    %v1202 = vmul.f32 %v594, %v1200
    %v1203 = vadd.f32 %v1191, %v1201
    %v1204 = vadd.f32 %v1192, %v1202
    %1205 = vrot.lane.b32.xlu0 %v897, 110
    %v1206 = vpop.permute.xlu0 %1205
    %1207 = vrot.lane.b32.xlu0 %v987, 110
    %v1208 = vpop.permute.xlu0 %1207
    %v1209 = vsel %vm612, %v1206, %v1208
    %v1210 = vsel %vm612, %v1208, %v1206
    %v1211 = vlaneseq
    %v1212 = vshrl.u32 %v1211, 7
    %v1213 = vsub.s32 0, %v1212
    %v1214 = vrot.slane %v1209, %v1213
    %v1215 = vlaneseq
    %v1216 = vshrl.u32 %v1215, 7
    %v1217 = vsub.s32 0, %v1216
    %v1218 = vrot.slane %v1210, %v1217
    %v1219 = vmul.f32 %v617, %v1214
    %v1220 = vmul.f32 %v617, %v1218
    %v1221 = vadd.f32 %v1203, %v1219
    %v1222 = vadd.f32 %v1204, %v1220
    %v1223 = vlaneseq
    %v1224 = vshrl.u32 %v1223, 7
    %v1225 = vsub.s32 1, %v1224
    %v1226 = vrot.slane %v1209, %v1225
    %v1227 = vlaneseq
    %v1228 = vshrl.u32 %v1227, 7
    %v1229 = vsub.s32 1, %v1228
    %v1230 = vrot.slane %v1210, %v1229
    %v1231 = vmul.f32 %v633, %v1226
    %v1232 = vmul.f32 %v633, %v1230
    %v1233 = vadd.f32 %v1221, %v1231
    %v1234 = vadd.f32 %v1222, %v1232
    %v1235 = vlaneseq
    %v1236 = vshrl.u32 %v1235, 7
    %v1237 = vsub.s32 2, %v1236
    %v1238 = vrot.slane %v1209, %v1237
    %v1239 = vlaneseq
    %v1240 = vshrl.u32 %v1239, 7
    %v1241 = vsub.s32 2, %v1240
    %v1242 = vrot.slane %v1210, %v1241
    %v1243 = vmul.f32 %v649, %v1238
    %v1244 = vmul.f32 %v649, %v1242
    %v1245 = vadd.f32 %v1233, %v1243
    %v1246 = vadd.f32 %v1234, %v1244
    %v1247 = vlaneseq
    %v1248 = vshrl.u32 %v1247, 7
    %v1249 = vsub.s32 3, %v1248
    %v1250 = vrot.slane %v1209, %v1249
    %v1251 = vlaneseq
    %v1252 = vshrl.u32 %v1251, 7
    %v1253 = vsub.s32 3, %v1252
    %v1254 = vrot.slane %v1210, %v1253
    %v1255 = vmul.f32 %v665, %v1250
    %v1256 = vmul.f32 %v665, %v1254
    %v1257 = vadd.f32 %v1245, %v1255
    %v1258 = vadd.f32 %v1246, %v1256
    %1259 = vrot.lane.b32.xlu0 %v897, 96
    %v1260 = vpop.permute.xlu0 %1259
    %1261 = vrot.lane.b32.xlu0 %v987, 96
    %v1262 = vpop.permute.xlu0 %1261
    %v1263 = vsel %vm683, %v1260, %v1262
    %v1264 = vsel %vm683, %v1262, %v1260
    %v1265 = vlaneseq
    %v1266 = vshrl.u32 %v1265, 7
    %v1267 = vsub.s32 0, %v1266
    %v1268 = vrot.slane %v1263, %v1267
    %v1269 = vlaneseq
    %v1270 = vshrl.u32 %v1269, 7
    %v1271 = vsub.s32 0, %v1270
    %v1272 = vrot.slane %v1264, %v1271
    %v1273 = vmul.f32 %v688, %v1268
    %v1274 = vmul.f32 %v688, %v1272
    %v1275 = vadd.f32 %v1257, %v1273
    %v1276 = vadd.f32 %v1258, %v1274
    %v1277 = vlaneseq
    %v1278 = vshrl.u32 %v1277, 7
    %v1279 = vsub.s32 1, %v1278
    %v1280 = vrot.slane %v1263, %v1279
    %v1281 = vlaneseq
    %v1282 = vshrl.u32 %v1281, 7
    %v1283 = vsub.s32 1, %v1282
    %v1284 = vrot.slane %v1264, %v1283
    %v1285 = vmul.f32 %v704, %v1280
    %v1286 = vmul.f32 %v704, %v1284
    %v1287 = vadd.f32 %v1275, %v1285
    %v1288 = vadd.f32 %v1276, %v1286
    %v1289 = vlaneseq
    %v1290 = vshrl.u32 %v1289, 7
    %v1291 = vsub.s32 2, %v1290
    %v1292 = vrot.slane %v1263, %v1291
    %v1293 = vlaneseq
    %v1294 = vshrl.u32 %v1293, 7
    %v1295 = vsub.s32 2, %v1294
    %v1296 = vrot.slane %v1264, %v1295
    %v1297 = vmul.f32 %v720, %v1292
    %v1298 = vmul.f32 %v720, %v1296
    %v1299 = vadd.f32 %v1287, %v1297
    %v1300 = vadd.f32 %v1288, %v1298
    %v1301 = vlaneseq
    %v1302 = vshrl.u32 %v1301, 7
    %v1303 = vsub.s32 3, %v1302
    %v1304 = vrot.slane %v1263, %v1303
    %v1305 = vlaneseq
    %v1306 = vshrl.u32 %v1305, 7
    %v1307 = vsub.s32 3, %v1306
    %v1308 = vrot.slane %v1264, %v1307
    %v1309 = vmul.f32 %v736, %v1304
    %v1310 = vmul.f32 %v736, %v1308
    %v1311 = vadd.f32 %v1299, %v1309
    %v1312 = vadd.f32 %v1300, %v1310
    %1313 = vrot.lane.b32.xlu0 %v897, 95
    %v1314 = vpop.permute.xlu0 %1313
    %1315 = vrot.lane.b32.xlu0 %v987, 95
    %v1316 = vpop.permute.xlu0 %1315
    %v1317 = vsel %vm754, %v1314, %v1316
    %v1318 = vsel %vm754, %v1316, %v1314
    %v1319 = vlaneseq
    %v1320 = vshrl.u32 %v1319, 7
    %v1321 = vsub.s32 0, %v1320
    %v1322 = vrot.slane %v1317, %v1321
    %v1323 = vlaneseq
    %v1324 = vshrl.u32 %v1323, 7
    %v1325 = vsub.s32 0, %v1324
    %v1326 = vrot.slane %v1318, %v1325
    %v1327 = vmul.f32 %v759, %v1322
    %v1328 = vmul.f32 %v759, %v1326
    %v1329 = vadd.f32 %v1311, %v1327
    %v1330 = vadd.f32 %v1312, %v1328
    %v1331 = vlaneseq
    %v1332 = vshrl.u32 %v1331, 7
    %v1333 = vsub.s32 1, %v1332
    %v1334 = vrot.slane %v1317, %v1333
    %v1335 = vlaneseq
    %v1336 = vshrl.u32 %v1335, 7
    %v1337 = vsub.s32 1, %v1336
    %v1338 = vrot.slane %v1318, %v1337
    %v1339 = vmul.f32 %v775, %v1334
    %v1340 = vmul.f32 %v775, %v1338
    %v1341 = vadd.f32 %v1329, %v1339
    %v1342 = vadd.f32 %v1330, %v1340
    %v1343 = vlaneseq
    %v1344 = vshrl.u32 %v1343, 7
    %v1345 = vsub.s32 2, %v1344
    %v1346 = vrot.slane %v1317, %v1345
    %v1347 = vlaneseq
    %v1348 = vshrl.u32 %v1347, 7
    %v1349 = vsub.s32 2, %v1348
    %v1350 = vrot.slane %v1318, %v1349
    %v1351 = vmul.f32 %v791, %v1346
    %v1352 = vmul.f32 %v791, %v1350
    %v1353 = vadd.f32 %v1341, %v1351
    %v1354 = vadd.f32 %v1342, %v1352
    %v1355 = vlaneseq
    %v1356 = vshrl.u32 %v1355, 7
    %v1357 = vsub.s32 3, %v1356
    %v1358 = vrot.slane %v1317, %v1357
    %v1359 = vlaneseq
    %v1360 = vshrl.u32 %v1359, 7
    %v1361 = vsub.s32 3, %v1360
    %v1362 = vrot.slane %v1318, %v1361
    %v1363 = vmul.f32 %v807, %v1358
    %v1364 = vmul.f32 %v807, %v1362
    %v1365 = vadd.f32 %v1353, %v1363
    %v1366 = vadd.f32 %v1354, %v1364
    %1367 = vrot.lane.b32.xlu0 %v897, 94
    %v1368 = vpop.permute.xlu0 %1367
    %1369 = vrot.lane.b32.xlu0 %v987, 94
    %v1370 = vpop.permute.xlu0 %1369
    %v1371 = vsel %vm825, %v1368, %v1370
    %v1372 = vsel %vm825, %v1370, %v1368
    %v1373 = vlaneseq
    %v1374 = vshrl.u32 %v1373, 7
    %v1375 = vsub.s32 0, %v1374
    %v1376 = vrot.slane %v1371, %v1375
    %v1377 = vlaneseq
    %v1378 = vshrl.u32 %v1377, 7
    %v1379 = vsub.s32 0, %v1378
    %v1380 = vrot.slane %v1372, %v1379
    %v1381 = vmul.f32 %v830, %v1376
    %v1382 = vmul.f32 %v830, %v1380
    %v1383 = vadd.f32 %v1365, %v1381
    %v1384 = vadd.f32 %v1366, %v1382
    %v1385 = vlaneseq
    %v1386 = vshrl.u32 %v1385, 7
    %v1387 = vsub.s32 1, %v1386
    %v1388 = vrot.slane %v1371, %v1387
    %v1389 = vlaneseq
    %v1390 = vshrl.u32 %v1389, 7
    %v1391 = vsub.s32 1, %v1390
    %v1392 = vrot.slane %v1372, %v1391
    %v1393 = vmul.f32 %v846, %v1388
    %v1394 = vmul.f32 %v846, %v1392
    %v1395 = vadd.f32 %v1383, %v1393
    %v1396 = vadd.f32 %v1384, %v1394
    %v1397 = vlaneseq
    %v1398 = vshrl.u32 %v1397, 7
    %v1399 = vsub.s32 2, %v1398
    %v1400 = vrot.slane %v1371, %v1399
    %v1401 = vlaneseq
    %v1402 = vshrl.u32 %v1401, 7
    %v1403 = vsub.s32 2, %v1402
    %v1404 = vrot.slane %v1372, %v1403
    %v1405 = vmul.f32 %v862, %v1400
    %v1406 = vmul.f32 %v862, %v1404
    %v1407 = vadd.f32 %v1395, %v1405
    %v1408 = vadd.f32 %v1396, %v1406
    %v1409 = vlaneseq
    %v1410 = vshrl.u32 %v1409, 7
    %v1411 = vsub.s32 3, %v1410
    %v1412 = vrot.slane %v1371, %v1411
    %v1413 = vlaneseq
    %v1414 = vshrl.u32 %v1413, 7
    %v1415 = vsub.s32 3, %v1414
    %v1416 = vrot.slane %v1372, %v1415
    %v1417 = vmul.f32 %v878, %v1412
    %v1418 = vmul.f32 %v878, %v1416
    %v1419 = vadd.f32 %v1407, %v1417
    %v1420 = vadd.f32 %v1408, %v1418
    %v1421 = vmax.f32 %v1419, 0.0
    %v1422 = vmax.f32 %v1420, 0.0
    %s1423 = scalar_lea.vmem %s9, 16
    %1424 = vst [vmem:[%s1423] sm:$0xff] %v1421
    %1425 = vst [vmem:[%s1423 + $0x8] sm:$0xff] %v1422
    // Predicated region
    $region34: #{fused_forward.1} parent=1 // pred_check
      _
    $region35: #{fused_forward.1} parent=1 // pred_check_branch
      %1427 = sbr.rel (0) target = $region37
    $region36: #{fused_forward.1} parent=1 // pred_region
      %s1429 = ssub.s32 32, 32
      %1430 = vsyncadd [#allocation3], %s1429
      %s1432 = sshll.u32 [#allocation2], 4
      %s1433 = int_to_ptr.vmem [resolvable:$true] %s1432
      %1435 = dma.vmem_to_hbm [thread:$0]  %s1433, 32, %s8, [#allocation3]
    $region37: #{fused_forward.1} parent=1 // pred_fallthru
      _
    // Predicated region
    $region38: #{fused_forward.1} parent=1 // pred_check
      _
    $region39: #{fused_forward.1} parent=1 // pred_check_branch
      %1437 = sbr.rel (0) target = $region41
    $region40: #{fused_forward.1} parent=1 // pred_region
      _
    $region41: #{fused_forward.1} parent=1 // pred_fallthru
      _
    // Predicated region
    $region42: #{fused_forward.1} parent=1 // pred_check
      _
    $region43: #{fused_forward.1} parent=1 // pred_check_branch
      %1439 = sbr.rel (0) target = $region45
    $region44: #{fused_forward.1} parent=1 // pred_region
      %1440 = dma.done [#allocation3], 32
    $region45: #{fused_forward.1} parent=1 // pred_fallthru
      _
    // Predicated region
    $region46: #{fused_forward.1} parent=1 // pred_check
      _
    $region47: #{fused_forward.1} parent=1 // pred_check_branch
      %1442 = sbr.rel (0) target = $region49
    $region48: #{fused_forward.1} parent=1 // pred_region
      _
    $region49: #{fused_forward.1} parent=1 // pred_fallthru
      _
    %1443 = vsyncpa [#allocation3], 1

</llo_original>
